<compile_context>
chip_gen: v7x
topology: tpu7x:2x2x1
jax: 0.10.0
libtpu: 0.0.40
codegen_flags: <defaults>
</compile_context>

<pallas_src>
import functools

import jax
import jax.numpy as jnp
from jax import lax
from jax.experimental import pallas as pl
from jax.experimental.pallas import tpu as pltpu


# ---------------------------------------------------------------------------
# Pallas kernel: one grid step == (batch element, query tile).
# ---------------------------------------------------------------------------
def _attention_kernel(xq_ref, xkv_ref, wf_ref, bf_ref, wkv_ref, bkv_ref, bv_ref,
                      gamma_ref, o_ref, g_scr, hv_scr, *, hc_pad, exp_dtype):
    # --- per-batch (hoisted) key / folded-value projection --------------------
    # Computed once per batch (q == 0) into bf16 VMEM scratch; reused by all query
    # tiles of that batch.  Split at hc_pad (multiple of 8) -> aligned sublane views.
    @pl.when(pl.program_id(1) == 0)
    def _():
        x_full = xkv_ref[0]                                            # (C, N)
        kv = (jnp.dot(wkv_ref[...], x_full, preferred_element_type=jnp.float32)
              + bkv_ref[...])                                          # (hc_pad+C+1, N)
        g_scr[...] = kv[0:hc_pad, :].astype(jnp.bfloat16)              # keys g
        hv_scr[...] = kv[hc_pad:, :].astype(jnp.bfloat16)              # [Wv@h ; ones]

    # --- per-query-tile work ---------------------------------------------------
    xq = xq_ref[0]                                                     # (C, tq) query / residual

    # f projection on the query tile: (hc_pad, tq)
    f = (jnp.dot(wf_ref[...], xq, preferred_element_type=jnp.float32)
         + bf_ref[...])

    # attention logits s[n, m] = sum_c f[c, n] * g[c, m]  -> (tq, N)
    s = lax.dot_general(f.astype(jnp.bfloat16), g_scr[...],
                        (((0,), (0,)), ((), ())),
                        preferred_element_type=jnp.float32)

    # numerically stable softmax numerator; exp runs in bf16 on v6e/v7x (bf16 EUP),
    # f32 elsewhere.  Normalization is deferred past the value matmul (ones row).
    p = jnp.exp((s - jnp.max(s, axis=-1, keepdims=True)).astype(exp_dtype))

    # o_aug[c, n] = sum_m hv_aug[c, m] * p[n, m] -> (C+1, tq);
    # last row = row-sums of p = softmax denominator.
    o_aug = lax.dot_general(hv_scr[...], p.astype(jnp.bfloat16),
                            (((1,), (1,)), ((), ())),
                            preferred_element_type=jnp.float32)
    c = o_aug.shape[0] - 1
    ov = (o_aug[0:c, :] * pl.reciprocal(o_aug[c:c + 1, :], approx=True)
          + bv_ref[...])                                               # (C, tq)

    # gamma * attention + residual, lane-dense store.
    o_ref[0] = gamma_ref[0] * ov + xq


# ---------------------------------------------------------------------------
# Generation-aware hardware config.
# ---------------------------------------------------------------------------
def _hw_config():
    try:
        kind = jax.devices()[0].device_kind.lower()
    except Exception:
        kind = ""
    # bf16 VPU/EUP only exists on v6e / v7x; keep softmax exp in f32 elsewhere (v5e etc.).
    use_bf16_exp = ("v6" in kind) or ("v7" in kind) or ("7x" in kind)
    try:
        vmem_bytes = int(pltpu.get_tpu_info().vmem_capacity_bytes)
    except Exception:
        vmem_bytes = (64 if ("v7" in kind or "7x" in kind) else 128) * 1024 * 1024
    if vmem_bytes <= 64 * 1024 * 1024:          # v7x: 64 MiB physical per TC
        score_cap = 4 * 1024 * 1024
        vmem_limit = 48 * 1024 * 1024
    else:                                       # v5e / v6e: 128 MiB
        score_cap = 16 * 1024 * 1024
        vmem_limit = 96 * 1024 * 1024
    return use_bf16_exp, score_cap, vmem_limit


# ---------------------------------------------------------------------------
# Query-tile size: largest tq with tq | N, tq % 128 == 0 and the f32 score tile
# (tq x N) under max_score_bytes.  Never exceeds the cap except at the 128 floor.
# ---------------------------------------------------------------------------
def _choose_tq(N, max_score_bytes):
    if N % 128 != 0:
        # Single query tile (small / irregular N).  TODO(synk): flash-style key loop.
        return N
    best = 128
    for tq in range(128, N + 1, 128):
        if N % tq == 0 and tq * N * 4 <= max_score_bytes:
            best = max(best, tq)
    return best


# ---------------------------------------------------------------------------
# Wrapper: NCHW glue (free reshapes only), weight fusion/folding + pallas_call.
# ---------------------------------------------------------------------------
@jax.jit
def attention_pallas(x_nchw, wf, bf, wg, bg, wh, bh, wv, bv, gamma):
    """x_nchw: (nb, C, H, W) f32.  wf/wg/wh: (HC, C), wv: (C, HC), biases 1-D, gamma scalar."""
    nb, nc, H, W = x_nchw.shape
    N = H * W
    hc = wf.shape[0]
    hc_pad = ((hc + 7) // 8) * 8                       # 8-row alignment for sublane splits

    use_bf16_exp, score_cap, vmem_limit = _hw_config()
    tq = _choose_tq(N, score_cap)

    # NCHW -> (nb, C, N): pure reshape, no transpose (matches .view(nb, C, H*W)).
    x_seq = x_nchw.reshape(nb, nc, N)

    # f projection weights, zero-padded to hc_pad rows (padded rows contribute 0 logits).
    wf_pad = jnp.zeros((hc_pad, nc), jnp.float32).at[:hc].set(wf)
    bf_pad = jnp.zeros((hc_pad, 1), jnp.float32).at[:hc, 0].set(bf)

    # Key / folded-value projection.  Wv folded into Wh (applied to the already
    # spectrally-normalized weights): w_vh = wv @ wh, b_vh = wv @ bh.  The trailing
    # zero-weight / unit-bias row yields an all-ones row -> softmax denominator falls
    # out of the same value matmul for free.
    w_vh = wv @ wh                                      # (C, C)
    b_vh = wv @ bh                                      # (C,)
    wg_pad = jnp.zeros((hc_pad, nc), jnp.float32).at[:hc].set(wg)
    bg_pad = jnp.zeros((hc_pad,), jnp.float32).at[:hc].set(bg)
    w_kv = jnp.concatenate([wg_pad, w_vh, jnp.zeros((1, nc), jnp.float32)], axis=0)
    b_kv = jnp.concatenate([bg_pad, b_vh, jnp.ones((1,), jnp.float32)],
                           axis=0).reshape(hc_pad + nc + 1, 1)

    bv2 = bv.reshape(nc, 1)
    gamma1 = jnp.reshape(gamma, (1,)).astype(jnp.float32)

    kernel = functools.partial(
        _attention_kernel, hc_pad=hc_pad,
        exp_dtype=jnp.bfloat16 if use_bf16_exp else jnp.float32)

    out_seq = pl.pallas_call(
        kernel,
        out_shape=jax.ShapeDtypeStruct((nb, nc, N), jnp.float32),
        grid=(nb, N // tq),
        in_specs=[
            pl.BlockSpec((1, nc, tq), lambda b, q: (b, 0, q)),            # x query tile
            pl.BlockSpec((1, nc, N), lambda b, q: (b, 0, 0)),             # x full (DMA'd once/batch)
            pl.BlockSpec((hc_pad, nc), lambda b, q: (0, 0)),              # Wf (padded)
            pl.BlockSpec((hc_pad, 1), lambda b, q: (0, 0)),               # bf (padded)
            pl.BlockSpec((hc_pad + nc + 1, nc), lambda b, q: (0, 0)),     # [Wg; Wv@Wh; 0]
            pl.BlockSpec((hc_pad + nc + 1, 1), lambda b, q: (0, 0)),      # [bg; Wv@bh; 1]
            pl.BlockSpec((nc, 1), lambda b, q: (0, 0)),                   # bv
            pl.BlockSpec(memory_space=pltpu.MemorySpace.SMEM),            # gamma scalar
        ],
        out_specs=pl.BlockSpec((1, nc, tq), lambda b, q: (b, 0, q)),
        scratch_shapes=[
            pltpu.VMEM((hc_pad, N), jnp.bfloat16),                        # g   (per batch)
            pltpu.VMEM((nc + 1, N), jnp.bfloat16),                        # [Wv@h; ones] (per batch)
        ],
        compiler_params=pltpu.CompilerParams(
            dimension_semantics=("parallel", "arbitrary"),
            vmem_limit_bytes=vmem_limit),
    )(x_seq, x_seq, wf_pad, bf_pad, w_kv, b_kv, bv2, gamma1)

    # (nb, C, N) -> NCHW: free reshape.
    return out_seq.reshape(nb, nc, H, W)


# ---------------------------------------------------------------------------
# Parameter setup (deterministic, synthetic) + spectral normalization.
# ---------------------------------------------------------------------------
def spectral_normalize(w, n_iters=30):
    """Divide w (out, in) by its largest singular value (power iteration), matching
    the normalization torch.nn.utils.spectral_norm applies in forward."""
    u = jnp.ones((w.shape[0],), jnp.float32) / jnp.sqrt(w.shape[0])
    for _ in range(n_iters):
        v = w.T @ u
        v = v / (jnp.linalg.norm(v) + 1e-12)
        u = w @ v
        u = u / (jnp.linalg.norm(u) + 1e-12)
    sigma = u @ (w @ v)
    return w / sigma


def make_params(key, channels, hidden_channels):
    ks = jax.random.split(key, 8)
    wf = spectral_normalize(jax.random.normal(ks[0], (hidden_channels, channels), jnp.float32) * 0.3)
    wg = spectral_normalize(jax.random.normal(ks[1], (hidden_channels, channels), jnp.float32) * 0.3)
    wh = spectral_normalize(jax.random.normal(ks[2], (hidden_channels, channels), jnp.float32) * 0.3)
    wv = spectral_normalize(jax.random.normal(ks[3], (channels, hidden_channels), jnp.float32) * 0.3)
    bf = jax.random.normal(ks[4], (hidden_channels,), jnp.float32) * 0.1
    bg = jax.random.normal(ks[5], (hidden_channels,), jnp.float32) * 0.1
    bh = jax.random.normal(ks[6], (hidden_channels,), jnp.float32) * 0.1
    bv = jax.random.normal(ks[7], (channels,), jnp.float32) * 0.1
    gamma = jnp.float32(0.0)   # nn.Parameter(torch.FloatTensor([0.0]))
    return wf, bf, wg, bg, wh, bh, wv, bv, gamma


# ---------------------------------------------------------------------------
# Pure-JAX reference following the PyTorch NCHW math exactly.
# ---------------------------------------------------------------------------
def attention_reference(x, wf, bf, wg, bg, wh, bh, wv, bv, gamma):
    nb, nc, H, W = x.shape
    xf = x.reshape(nb, nc, H * W)
    conv1x1 = lambda w, b, inp: jnp.einsum('oi,bin->bon', w, inp) + b[None, :, None]
    f = conv1x1(wf, bf, xf)
    g = conv1x1(wg, bg, xf)
    h = conv1x1(wh, bh, xf)
    s = jnp.einsum('bhn,bhm->bnm', f, g)                 # f^T @ g
    beta = jax.nn.softmax(s, axis=-1)
    o = jnp.einsum('bnm,bhm->bnh', beta, h)              # beta @ h^T
    o = jnp.transpose(o, (0, 2, 1))                      # (nb, HC, N)
    ov = conv1x1(wv, bv, o)                              # (nb, C, N)
    return (gamma * ov + xf).reshape(nb, nc, H, W)


if __name__ == "__main__":
    key = jax.random.PRNGKey(0)
    kx, kp = jax.random.split(key)

    batch, channels, hidden_channels, H, W = 2, 4, 8, 16, 16
    x = jax.random.normal(kx, (batch, channels, H, W), jnp.float32)
    wf, bf, wg, bg, wh, bh, wv, bv, gamma0 = make_params(kp, channels, hidden_channels)

    # 1) gamma as initialized in the module (0.0): residual path must be exact.
    out0 = attention_pallas(x, wf, bf, wg, bg, wh, bh, wv, bv, gamma0)
    jax.block_until_ready(out0)
    ref0 = attention_reference(x, wf, bf, wg, bg, wh, bh, wv, bv, gamma0)
    assert jnp.allclose(out0, ref0, atol=1e-5, rtol=1e-5)

    # 2) nonzero gamma (as after training) exercising the full attention path.
    #    bf16 matmul/exp inputs + approx reciprocal loosen tolerance to ~1e-2.
    gamma1 = jnp.float32(0.5)
    out1 = attention_pallas(x, wf, bf, wg, bg, wh, bh, wv, bv, gamma1)
    jax.block_until_ready(out1)
    ref1 = attention_reference(x, wf, bf, wg, bg, wh, bh, wv, bv, gamma1)
    assert jnp.allclose(out1, ref1, atol=3e-2, rtol=3e-2), \
        float(jnp.max(jnp.abs(out1 - ref1)))

    print("KERNEL_OK")
</pallas_src>

<mosaic_0001>
module attributes {stable_mosaic.version = 11 : i64} {
  func.func @_attention_kernel(%arg0: i32, %arg1: i32, %arg2: memref<1x4x256xf32, #tpu.memory_space<vmem>>, %arg3: memref<1x4x256xf32, #tpu.memory_space<vmem>>, %arg4: memref<8x4xf32, #tpu.memory_space<vmem>>, %arg5: memref<8x1xf32, #tpu.memory_space<vmem>>, %arg6: memref<13x4xf32, #tpu.memory_space<vmem>>, %arg7: memref<13x1xf32, #tpu.memory_space<vmem>>, %arg8: memref<4x1xf32, #tpu.memory_space<vmem>>, %arg9: memref<1xf32, #tpu.memory_space<smem>>, %arg10: memref<1x4x256xf32, #tpu.memory_space<vmem>>, %arg11: memref<8x256xbf16, #tpu.memory_space<vmem>>, %arg12: memref<5x256xbf16, #tpu.memory_space<vmem>>) attributes {dimension_semantics = [#tpu.dimension_semantics<parallel>, #tpu.dimension_semantics<arbitrary>], iteration_bounds = array<i64: 2, 1>, scalar_prefetch = 0 : i64, scratch_operands = 2 : i64, tpu.core_type = #tpu.core_type<tc>, window_params = [{transform_indices = @transform_0, window_bounds = array<i64: 1, 4, 256>}, {transform_indices = @transform_1, window_bounds = array<i64: 1, 4, 256>}, {pipeline_mode = #tpu.pipeline_mode<synchronous>, transform_indices = @transform_2, window_bounds = array<i64: 8, 4>}, {pipeline_mode = #tpu.pipeline_mode<synchronous>, transform_indices = @transform_3, window_bounds = array<i64: 8, 1>}, {pipeline_mode = #tpu.pipeline_mode<synchronous>, transform_indices = @transform_4, window_bounds = array<i64: 13, 4>}, {pipeline_mode = #tpu.pipeline_mode<synchronous>, transform_indices = @transform_5, window_bounds = array<i64: 13, 1>}, {pipeline_mode = #tpu.pipeline_mode<synchronous>, transform_indices = @transform_6, window_bounds = array<i64: 4, 1>}, {transform_indices = @transform_7, window_bounds = array<i64: 1>}, {transform_indices = @transform_8, window_bounds = array<i64: 1, 4, 256>}]} {
    %c0_i32 = arith.constant 0 : i32
    %0 = arith.cmpi eq, %arg1, %c0_i32 : i32
    %1 = arith.extui %0 : i1 to i32
    %c0_i32_0 = arith.constant 0 : i32
    %2 = arith.cmpi ne, %1, %c0_i32_0 : i32
    scf.if %2 {
      %c0_20 = arith.constant 0 : index
      %c0_21 = arith.constant 0 : index
      %c0_22 = arith.constant 0 : index
      %36 = vector.load %arg3[%c0_20, %c0_21, %c0_22] : memref<1x4x256xf32, #tpu.memory_space<vmem>>, vector<1x4x256xf32>
      %37 = vector.shape_cast %36 : vector<1x4x256xf32> to vector<4x256xf32>
      %c0_23 = arith.constant 0 : index
      %c0_24 = arith.constant 0 : index
      %38 = vector.load %arg6[%c0_23, %c0_24] : memref<13x4xf32, #tpu.memory_space<vmem>>, vector<13x4xf32>
      %cst_25 = arith.constant dense<0.000000e+00> : vector<13x256xf32>
      %39 = tpu.matmul %38, %37, %cst_25 {dimension_numbers = #tpu.dot_dimension_numbers<[1], [0], [0], [1], [0, 0, 1, 1], [], []>} : vector<13x4xf32>, vector<4x256xf32>, vector<13x256xf32> -> vector<13x256xf32>
      %c0_26 = arith.constant 0 : index
      %c0_27 = arith.constant 0 : index
      %40 = vector.load %arg7[%c0_26, %c0_27] : memref<13x1xf32, #tpu.memory_space<vmem>>, vector<13x1xf32>
      %41 = vector.broadcast %40 : vector<13x1xf32> to vector<13x256xf32>
      %42 = arith.addf %39, %41 : vector<13x256xf32>
      %43 = vector.extract_strided_slice %42 {offsets = [0, 0], sizes = [8, 256], strides = [1, 1]} : vector<13x256xf32> to vector<8x256xf32>
      %44 = arith.truncf %43 : vector<8x256xf32> to vector<8x256xbf16>
      %c0_28 = arith.constant 0 : index
      %c0_29 = arith.constant 0 : index
      %45 = vector.load %arg11[%c0_28, %c0_29] : memref<8x256xbf16, #tpu.memory_space<vmem>>, vector<8x256xbf16>
      tpu.vector_store %arg11[%c0_28, %c0_29], %44 {strides = array<i32>} : memref<8x256xbf16, #tpu.memory_space<vmem>>, vector<8x256xbf16>,
      %46 = vector.extract_strided_slice %42 {offsets = [8, 0], sizes = [5, 256], strides = [1, 1]} : vector<13x256xf32> to vector<5x256xf32>
      %47 = arith.truncf %46 : vector<5x256xf32> to vector<5x256xbf16>
      %c0_30 = arith.constant 0 : index
      %c0_31 = arith.constant 0 : index
      %48 = vector.load %arg12[%c0_30, %c0_31] : memref<5x256xbf16, #tpu.memory_space<vmem>>, vector<5x256xbf16>
      tpu.vector_store %arg12[%c0_30, %c0_31], %47 {strides = array<i32>} : memref<5x256xbf16, #tpu.memory_space<vmem>>, vector<5x256xbf16>,
    } else {
    }
    %c0 = arith.constant 0 : index
    %c0_1 = arith.constant 0 : index
    %c0_2 = arith.constant 0 : index
    %3 = vector.load %arg2[%c0, %c0_1, %c0_2] : memref<1x4x256xf32, #tpu.memory_space<vmem>>, vector<1x4x256xf32>
    %4 = vector.shape_cast %3 : vector<1x4x256xf32> to vector<4x256xf32>
    %c0_3 = arith.constant 0 : index
    %c0_4 = arith.constant 0 : index
    %5 = vector.load %arg4[%c0_3, %c0_4] : memref<8x4xf32, #tpu.memory_space<vmem>>, vector<8x4xf32>
    %cst = arith.constant dense<0.000000e+00> : vector<8x256xf32>
    %6 = tpu.matmul %5, %4, %cst {dimension_numbers = #tpu.dot_dimension_numbers<[1], [0], [0], [1], [0, 0, 1, 1], [], []>} : vector<8x4xf32>, vector<4x256xf32>, vector<8x256xf32> -> vector<8x256xf32>
    %c0_5 = arith.constant 0 : index
    %c0_6 = arith.constant 0 : index
    %7 = vector.load %arg5[%c0_5, %c0_6] : memref<8x1xf32, #tpu.memory_space<vmem>>, vector<8x1xf32>
    %8 = vector.broadcast %7 : vector<8x1xf32> to vector<8x256xf32>
    %9 = arith.addf %6, %8 : vector<8x256xf32>
    %10 = arith.truncf %9 : vector<8x256xf32> to vector<8x256xbf16>
    %c0_7 = arith.constant 0 : index
    %c0_8 = arith.constant 0 : index
    %11 = vector.load %arg11[%c0_7, %c0_8] : memref<8x256xbf16, #tpu.memory_space<vmem>>, vector<8x256xbf16>
    %cst_9 = arith.constant dense<0.000000e+00> : vector<256x256xf32>
    %12 = tpu.matmul %10, %11, %cst_9 {dimension_numbers = #tpu.dot_dimension_numbers<[0], [0], [1], [1], [0, 1, 1, 1], [], []>} : vector<8x256xbf16>, vector<8x256xbf16>, vector<256x256xf32> -> vector<256x256xf32>
    %cst_10 = arith.constant dense<0xFF800000> : vector<256xf32>
    %13 = vector.multi_reduction <maximumf>, %12, %cst_10 [1] : vector<256x256xf32> to vector<256xf32>
    %14 = vector.shape_cast %13 : vector<256xf32> to vector<256x1xf32>
    %15 = vector.broadcast %14 : vector<256x1xf32> to vector<256x256xf32>
    %16 = arith.subf %12, %15 : vector<256x256xf32>
    %17 = math.exp %16 : vector<256x256xf32>
    %c0_11 = arith.constant 0 : index
    %c0_12 = arith.constant 0 : index
    %18 = vector.load %arg12[%c0_11, %c0_12] : memref<5x256xbf16, #tpu.memory_space<vmem>>, vector<5x256xbf16>
    %19 = arith.truncf %17 : vector<256x256xf32> to vector<256x256xbf16>
    %cst_13 = arith.constant dense<0.000000e+00> : vector<5x256xf32>
    %20 = tpu.matmul %18, %19, %cst_13 {dimension_numbers = #tpu.dot_dimension_numbers<[1], [1], [0], [0], [0, 0, 1, 0], [], []>} : vector<5x256xbf16>, vector<256x256xbf16>, vector<5x256xf32> -> vector<5x256xf32>
    %21 = vector.extract_strided_slice %20 {offsets = [0, 0], sizes = [4, 256], strides = [1, 1]} : vector<5x256xf32> to vector<4x256xf32>
    %22 = vector.extract_strided_slice %20 {offsets = [4, 0], sizes = [1, 256], strides = [1, 1]} : vector<5x256xf32> to vector<1x256xf32>
    %23 = tpu.reciprocal %22 {approx = true} : vector<1x256xf32> -> vector<1x256xf32>
    %24 = vector.broadcast %23 : vector<1x256xf32> to vector<4x256xf32>
    %25 = arith.mulf %21, %24 : vector<4x256xf32>
    %c0_14 = arith.constant 0 : index
    %c0_15 = arith.constant 0 : index
    %26 = vector.load %arg8[%c0_14, %c0_15] : memref<4x1xf32, #tpu.memory_space<vmem>>, vector<4x1xf32>
    %27 = vector.broadcast %26 : vector<4x1xf32> to vector<4x256xf32>
    %28 = arith.addf %25, %27 : vector<4x256xf32>
    %c0_16 = arith.constant 0 : index
    %29 = memref.load %arg9[%c0_16] : memref<1xf32, #tpu.memory_space<smem>>
    %30 = vector.broadcast %29 : f32 to vector<4x256xf32>
    %31 = arith.mulf %30, %28 : vector<4x256xf32>
    %32 = arith.addf %31, %4 : vector<4x256xf32>
    %c0_17 = arith.constant 0 : index
    %c0_18 = arith.constant 0 : index
    %c0_19 = arith.constant 0 : index
    %33 = vector.load %arg10[%c0_17, %c0_18, %c0_19] : memref<1x4x256xf32, #tpu.memory_space<vmem>>, vector<1x4x256xf32>
    %34 = vector.shape_cast %33 : vector<1x4x256xf32> to vector<4x256xf32>
    %35 = vector.shape_cast %32 : vector<4x256xf32> to vector<1x4x256xf32>
    tpu.vector_store %arg10[%c0_17, %c0_18, %c0_19], %35 {strides = array<i32>} : memref<1x4x256xf32, #tpu.memory_space<vmem>>, vector<1x4x256xf32>,
    return
  }
  func.func @transform_0(%arg0: i32, %arg1: i32) -> (i32, i32, i32) {
    %c0_i32 = arith.constant 0 : i32
    %c0_i32_0 = arith.constant 0 : i32
    return %arg0, %c0_i32, %arg1 : i32, i32, i32
  }
  func.func @transform_1(%arg0: i32, %arg1: i32) -> (i32, i32, i32) {
    %c0_i32 = arith.constant 0 : i32
    %c0_i32_0 = arith.constant 0 : i32
    %c0_i32_1 = arith.constant 0 : i32
    return %arg0, %c0_i32, %c0_i32_0 : i32, i32, i32
  }
  func.func @transform_2(%arg0: i32, %arg1: i32) -> (i32, i32) {
    %c0_i32 = arith.constant 0 : i32
    %c0_i32_0 = arith.constant 0 : i32
    %c0_i32_1 = arith.constant 0 : i32
    return %c0_i32, %c0_i32_0 : i32, i32
  }
  func.func @transform_3(%arg0: i32, %arg1: i32) -> (i32, i32) {
    %c0_i32 = arith.constant 0 : i32
    %c0_i32_0 = arith.constant 0 : i32
    %c0_i32_1 = arith.constant 0 : i32
    return %c0_i32, %c0_i32_0 : i32, i32
  }
  func.func @transform_4(%arg0: i32, %arg1: i32) -> (i32, i32) {
    %c0_i32 = arith.constant 0 : i32
    %c0_i32_0 = arith.constant 0 : i32
    %c0_i32_1 = arith.constant 0 : i32
    return %c0_i32, %c0_i32_0 : i32, i32
  }
  func.func @transform_5(%arg0: i32, %arg1: i32) -> (i32, i32) {
    %c0_i32 = arith.constant 0 : i32
    %c0_i32_0 = arith.constant 0 : i32
    %c0_i32_1 = arith.constant 0 : i32
    return %c0_i32, %c0_i32_0 : i32, i32
  }
  func.func @transform_6(%arg0: i32, %arg1: i32) -> (i32, i32) {
    %c0_i32 = arith.constant 0 : i32
    %c0_i32_0 = arith.constant 0 : i32
    %c0_i32_1 = arith.constant 0 : i32
    return %c0_i32, %c0_i32_0 : i32, i32
  }
  func.func @transform_7(%arg0: i32, %arg1: i32) -> i32 {
    %c0_i32 = arith.constant 0 : i32
    %c0_i32_0 = arith.constant 0 : i32
    return %c0_i32 : i32
  }
  func.func @transform_8(%arg0: i32, %arg1: i32) -> (i32, i32, i32) {
    %c0_i32 = arith.constant 0 : i32
    %c0_i32_0 = arith.constant 0 : i32
    return %arg0, %c0_i32, %arg1 : i32, i32, i32
  }
}

</mosaic_0001>

<llo_original>
// kernel: attention_pallas.1
$region0: #{attention_pallas.1}
  #allocation0 [shape = 'u32[]', space=smem, size = 0x4, offset = 0x4, fixed_abs, tag = 'smem constant byte address 0x4 - core index']
  #allocation1 [shape = 'u32[144,128]{1,0:T(1,128)}', space=vmem, size = 0x12000, scoped, tag = 'internal scratch']
  #allocation2 [shape = 'bf16[8,256]{1,0:T(8,128)(2,1)}', space=vmem, size = 0x1000, scoped, tag = 'scratch operand']
  #allocation3 [shape = 'bf16[5,256]{1,0:T(8,128)(2,1)}', space=vmem, size = 0x1000, scoped, tag = 'scratch operand']
  #allocation4 [shape = 'f32[1]{0:T(128)S(6)}', space=smem, size = 0x200, scoped, tag = 'scoped memory for attention_pallas.1']
  %s0 = inlined_call_operand.hbm [shape: f32[2,4,256], index: 0, kind: input, shape index: {}, may-alias: {0,1}]
  %s1 = inlined_call_operand.hbm [shape: f32[2,4,256], index: 1, kind: input, shape index: {}, may-alias: {0,1}]
  %s2 = inlined_call_operand.hbm [shape: f32[8,4], index: 2, kind: input, shape index: {}]
  %s3 = inlined_call_operand.hbm [shape: f32[8,1], index: 3, kind: input, shape index: {}]
  %s4 = inlined_call_operand.hbm [shape: f32[13,4], index: 4, kind: input, shape index: {}]
  %s5 = inlined_call_operand.hbm [shape: f32[13,1], index: 5, kind: input, shape index: {}]
  %s6 = inlined_call_operand.hbm [shape: f32[4,1], index: 6, kind: input, shape index: {}]
  %s7 = inlined_call_operand.<no memory space> [shape: f32[1], index: 7, kind: input, shape index: {}]
  %s8 = inlined_call_operand.hbm [shape: f32[2,4,256], index: 8, kind: output, shape index: {}]
  %s9 = sld [smem:[#allocation0]]
  $region97: #{attention_pallas.1} parent=0
    _
  %s11 = ssub.s32 1, %s9
  %s12 = scalar_select 0, %s11, %s9
  %13 = sst [smem:[#allocation4]] %s7
  $region1: #{attention_pallas.1} parent=0
    #allocation5 [shape = 'u8[8192]{0}', space=vmem, size = 0x2000, scoped, tag = 'input window, operand 0']
    #allocation6 [shape = 's32[2]{0}', space=sflag, size = 0x8, scoped, tag = 'scoped memory for attention_pallas.1']
    #allocation7 [shape = 's32[2]{0}', space=sflag, size = 0x8, scoped, tag = 'scoped memory for attention_pallas.1']
    #allocation8 [shape = 'u8[8192]{0}', space=vmem, size = 0x2000, scoped, tag = 'input window, operand 1']
    #allocation9 [shape = 's32[2]{0}', space=sflag, size = 0x8, scoped, tag = 'scoped memory for attention_pallas.1']
    #allocation10 [shape = 'u8[4096]{0}', space=vmem, size = 0x1000, scoped, tag = 'input window, operand 2, single buffered']
    #allocation11 [shape = 'u8[4096]{0}', space=vmem, size = 0x1000, scoped, tag = 'input window, operand 3, single buffered']
    #allocation12 [shape = 's32[1]{0}', space=sflag, size = 0x4, scoped, tag = 'scoped memory for attention_pallas.1']
    #allocation13 [shape = 'u8[8192]{0}', space=vmem, size = 0x2000, scoped, tag = 'input window, operand 4, single buffered']
    #allocation14 [shape = 'u8[8192]{0}', space=vmem, size = 0x2000, scoped, tag = 'input window, operand 5, single buffered']
    #allocation15 [shape = 's32[1]{0}', space=sflag, size = 0x4, scoped, tag = 'scoped memory for attention_pallas.1']
    #allocation16 [shape = 'u8[2048]{0}', space=vmem, size = 0x800, scoped, tag = 'input window, operand 6, single buffered']
    #allocation17 [shape = 'u8[8192]{0}', space=vmem, size = 0x2000, scoped, tag = 'output window, operand 0']
    %14 = vsyncpa [#allocation6], 0
    %s15 = scalar_lea.sflag [#allocation6], 1
    %16 = vsyncpa %s15, 0
    %17 = vsyncpa [#allocation9], 0
    %s18 = scalar_lea.sflag [#allocation9], 1
    %19 = vsyncpa %s18, 0
    %20 = vsyncpa [#allocation12], 0
    %21 = vsyncpa [#allocation15], 0
    %22 = vsyncpa [#allocation7], 0
    %s23 = scalar_lea.sflag [#allocation7], 1
    %24 = vsyncpa %s23, 0
    loop: start=0, step=1, limit=4
    $region2: #{attention_pallas.1} parent=1 // loop_pre_header
      _
    $region3: #{attention_pallas.1} parent=1 // loop_header
      %s26 = sphi 0, %s30
      %p27 = scmp.ge.s32.totalorder %s26, 4
      %s33 = sphi 0, %s45
      %s34 = sphi 0, %s41
      %s35 = sphi 0, %s33
      %s36 = sphi 0, %s34
      %s37 = sphi 0, %s35
      %s38 = sphi 0, %s36
      %s50 = sphi 0, %s52
      %s53 = sphi 0, %s50
      %s54 = sphi 0, %s53
      %s70 = sphi 0, %s54
      %s76 = sphi 0, %s78
      %s79 = sphi 0, %s76
      %s80 = sphi 0, %s79
      %s96 = sphi 0, %s80
      %s100 = sphi 0, %s100
      %s102 = sphi 0, %s100
      %s103 = sphi 0, %s102
      %s117 = sphi 0, %s103
      %s121 = sphi 0, %s121
      %s123 = sphi 0, %s121
      %s124 = sphi 0, %s123
      %s138 = sphi 0, %s124
      %s142 = sphi 0, %s142
      %s144 = sphi 0, %s142
      %s145 = sphi 0, %s144
      %s159 = sphi 0, %s145
      %s163 = sphi 0, %s163
      %s165 = sphi 0, %s163
      %s166 = sphi 0, %s165
      %s180 = sphi 0, %s166
      %s184 = sphi 0, %s184
      %s186 = sphi 0, %s184
      %s187 = sphi 0, %s186
      %s201 = sphi 0, %s187
      %s205 = sphi 0, %s205
      %s207 = sphi 0, %s205
      %s208 = sphi 0, %s207
      %s222 = sphi 0, %s208
      %s230 = sphi 0, %s232
      %s233 = sphi 0, %s230
      %s234 = sphi 0, %s233
      %s250 = sphi 0, %s234
    $region4: #{attention_pallas.1} parent=1 // loop_header_branch
      %29 = sbr.rel (%p27) target = $region8
    $region5: #{attention_pallas.1} parent=1 // loop_body
      %s31 = ssub.s32 %s26, 1
      %s32 = ssub.s32 %s26, 2
      %s39 = sadd.s32 1, %s34
      %p40 = scmp.ge.s32.totalorder %s39, 1
      %s41 = scalar_select %p40, 0, %s39
      %s42 = sadd.s32 1, %s33
      %s43 = scalar_select %p40, %s42, %s33
      %p44 = scmp.ge.s32.totalorder %s43, 2
      %s45 = scalar_select %p44, 0, %s43
      %s46 = ssub.s32 %s33, %s45
      %s47 = ssub.s32 %s34, %s41
      %s48 = sor.u32 %s46, %s47
      %p49 = scmp.eq.s32.totalorder %s48, 0
      %s51 = sadd.s32 %s50, 1
      %s52 = scalar_select %p49, %s50, %s51
      %p55 = pneg %p49
      %p56 = scmp.eq.s32.totalorder %s26, 1
      %p57 = por %p55, %p56
      %p58 = scmp.ne.s32.totalorder %s50, %s53
      %p59 = scmp.eq.s32.totalorder %s26, 0
      %p60 = por %p58, %p59
      %p61 = scmp.ne.s32.totalorder %s50, %s53
      %p62 = scmp.eq.s32.totalorder %s31, 1
      %p63 = por %p61, %p62
      %p64 = scmp.ne.s32.totalorder %s53, %s54
      %p65 = scmp.eq.s32.totalorder %s31, 0
      %p66 = por %p64, %p65
      %p67 = scmp.ne.s32.totalorder %s53, %s54
      %p68 = scmp.eq.s32.totalorder %s32, 1
      %p69 = por %p67, %p68
      %p71 = scmp.ne.s32.totalorder %s54, %s70
      %p72 = scmp.eq.s32.totalorder %s32, 0
      %p73 = por %p71, %p72
      %s74 = ssub.s32 %s33, %s45
      %p75 = scmp.eq.s32.totalorder %s74, 0
      %s77 = sadd.s32 %s76, 1
      %s78 = scalar_select %p75, %s76, %s77
      %p81 = pneg %p75
      %p82 = scmp.eq.s32.totalorder %s26, 1
      %p83 = por %p81, %p82
      %p84 = scmp.ne.s32.totalorder %s76, %s79
      %p85 = scmp.eq.s32.totalorder %s26, 0
      %p86 = por %p84, %p85
      %p87 = scmp.ne.s32.totalorder %s76, %s79
      %p88 = scmp.eq.s32.totalorder %s31, 1
      %p89 = por %p87, %p88
      %p90 = scmp.ne.s32.totalorder %s79, %s80
      %p91 = scmp.eq.s32.totalorder %s31, 0
      %p92 = por %p90, %p91
      %p93 = scmp.ne.s32.totalorder %s79, %s80
      %p94 = scmp.eq.s32.totalorder %s32, 1
      %p95 = por %p93, %p94
      %p97 = scmp.ne.s32.totalorder %s80, %s96
      %p98 = scmp.eq.s32.totalorder %s32, 0
      %p99 = por %p97, %p98
      %s101 = sadd.s32 %s100, 1
      %p104 = scmp.eq.s32.totalorder %s26, 1
      %p105 = scmp.ne.s32.totalorder %s100, %s102
      %p106 = scmp.eq.s32.totalorder %s26, 0
      %p107 = por %p105, %p106
      %p108 = scmp.ne.s32.totalorder %s100, %s102
      %p109 = scmp.eq.s32.totalorder %s31, 1
      %p110 = por %p108, %p109
      %p111 = scmp.ne.s32.totalorder %s102, %s103
      %p112 = scmp.eq.s32.totalorder %s31, 0
      %p113 = por %p111, %p112
      %p114 = scmp.ne.s32.totalorder %s102, %s103
      %p115 = scmp.eq.s32.totalorder %s32, 1
      %p116 = por %p114, %p115
      %p118 = scmp.ne.s32.totalorder %s103, %s117
      %p119 = scmp.eq.s32.totalorder %s32, 0
      %p120 = por %p118, %p119
      %s122 = sadd.s32 %s121, 1
      %p125 = scmp.eq.s32.totalorder %s26, 1
      %p126 = scmp.ne.s32.totalorder %s121, %s123
      %p127 = scmp.eq.s32.totalorder %s26, 0
      %p128 = por %p126, %p127
      %p129 = scmp.ne.s32.totalorder %s121, %s123
      %p130 = scmp.eq.s32.totalorder %s31, 1
      %p131 = por %p129, %p130
      %p132 = scmp.ne.s32.totalorder %s123, %s124
      %p133 = scmp.eq.s32.totalorder %s31, 0
      %p134 = por %p132, %p133
      %p135 = scmp.ne.s32.totalorder %s123, %s124
      %p136 = scmp.eq.s32.totalorder %s32, 1
      %p137 = por %p135, %p136
      %p139 = scmp.ne.s32.totalorder %s124, %s138
      %p140 = scmp.eq.s32.totalorder %s32, 0
      %p141 = por %p139, %p140
      %s143 = sadd.s32 %s142, 1
      %p146 = scmp.eq.s32.totalorder %s26, 1
      %p147 = scmp.ne.s32.totalorder %s142, %s144
      %p148 = scmp.eq.s32.totalorder %s26, 0
      %p149 = por %p147, %p148
      %p150 = scmp.ne.s32.totalorder %s142, %s144
      %p151 = scmp.eq.s32.totalorder %s31, 1
      %p152 = por %p150, %p151
      %p153 = scmp.ne.s32.totalorder %s144, %s145
      %p154 = scmp.eq.s32.totalorder %s31, 0
      %p155 = por %p153, %p154
      %p156 = scmp.ne.s32.totalorder %s144, %s145
      %p157 = scmp.eq.s32.totalorder %s32, 1
      %p158 = por %p156, %p157
      %p160 = scmp.ne.s32.totalorder %s145, %s159
      %p161 = scmp.eq.s32.totalorder %s32, 0
      %p162 = por %p160, %p161
      %s164 = sadd.s32 %s163, 1
      %p167 = scmp.eq.s32.totalorder %s26, 1
      %p168 = scmp.ne.s32.totalorder %s163, %s165
      %p169 = scmp.eq.s32.totalorder %s26, 0
      %p170 = por %p168, %p169
      %p171 = scmp.ne.s32.totalorder %s163, %s165
      %p172 = scmp.eq.s32.totalorder %s31, 1
      %p173 = por %p171, %p172
      %p174 = scmp.ne.s32.totalorder %s165, %s166
      %p175 = scmp.eq.s32.totalorder %s31, 0
      %p176 = por %p174, %p175
      %p177 = scmp.ne.s32.totalorder %s165, %s166
      %p178 = scmp.eq.s32.totalorder %s32, 1
      %p179 = por %p177, %p178
      %p181 = scmp.ne.s32.totalorder %s166, %s180
      %p182 = scmp.eq.s32.totalorder %s32, 0
      %p183 = por %p181, %p182
      %s185 = sadd.s32 %s184, 1
      %p188 = scmp.eq.s32.totalorder %s26, 1
      %p189 = scmp.ne.s32.totalorder %s184, %s186
      %p190 = scmp.eq.s32.totalorder %s26, 0
      %p191 = por %p189, %p190
      %p192 = scmp.ne.s32.totalorder %s184, %s186
      %p193 = scmp.eq.s32.totalorder %s31, 1
      %p194 = por %p192, %p193
      %p195 = scmp.ne.s32.totalorder %s186, %s187
      %p196 = scmp.eq.s32.totalorder %s31, 0
      %p197 = por %p195, %p196
      %p198 = scmp.ne.s32.totalorder %s186, %s187
      %p199 = scmp.eq.s32.totalorder %s32, 1
      %p200 = por %p198, %p199
      %p202 = scmp.ne.s32.totalorder %s187, %s201
      %p203 = scmp.eq.s32.totalorder %s32, 0
      %p204 = por %p202, %p203
      %s206 = sadd.s32 %s205, 1
      %p209 = scmp.eq.s32.totalorder %s26, 1
      %p210 = scmp.ne.s32.totalorder %s205, %s207
      %p211 = scmp.eq.s32.totalorder %s26, 0
      %p212 = por %p210, %p211
      %p213 = scmp.ne.s32.totalorder %s205, %s207
      %p214 = scmp.eq.s32.totalorder %s31, 1
      %p215 = por %p213, %p214
      %p216 = scmp.ne.s32.totalorder %s207, %s208
      %p217 = scmp.eq.s32.totalorder %s31, 0
      %p218 = por %p216, %p217
      %p219 = scmp.ne.s32.totalorder %s207, %s208
      %p220 = scmp.eq.s32.totalorder %s32, 1
      %p221 = por %p219, %p220
      %p223 = scmp.ne.s32.totalorder %s208, %s222
      %p224 = scmp.eq.s32.totalorder %s32, 0
      %p225 = por %p223, %p224
      %s226 = ssub.s32 %s33, %s45
      %s227 = ssub.s32 %s34, %s41
      %s228 = sor.u32 %s226, %s227
      %p229 = scmp.eq.s32.totalorder %s228, 0
      %s231 = sadd.s32 %s230, 1
      %s232 = scalar_select %p229, %s230, %s231
      %p235 = pneg %p229
      %p236 = scmp.eq.s32.totalorder %s26, 1
      %p237 = por %p235, %p236
      %p238 = scmp.ne.s32.totalorder %s230, %s233
      %p239 = scmp.eq.s32.totalorder %s26, 0
      %p240 = por %p238, %p239
      %p241 = scmp.ne.s32.totalorder %s230, %s233
      %p242 = scmp.eq.s32.totalorder %s31, 1
      %p243 = por %p241, %p242
      %p244 = scmp.ne.s32.totalorder %s233, %s234
      %p245 = scmp.eq.s32.totalorder %s31, 0
      %p246 = por %p244, %p245
      %p247 = scmp.ne.s32.totalorder %s233, %s234
      %p248 = scmp.eq.s32.totalorder %s32, 1
      %p249 = por %p247, %p248
      %p251 = scmp.ne.s32.totalorder %s234, %s250
      %p252 = scmp.eq.s32.totalorder %s32, 0
      %p253 = por %p251, %p252
      %p254 = scmp.le.s32.totalorder 1, %s26
      %p255 = scmp.lt.s32.totalorder %s26, 3
      %p256 = pnand %p254, %p255
      %p257 = pneg %p256
      // Predicated region
      $region9: #{attention_pallas.1} parent=5 // pred_check
        _
      $region10: #{attention_pallas.1} parent=5 // pred_check_branch
        %259 = sbr.rel (%p256) target = $region12
      $region11: #{attention_pallas.1} parent=5 // pred_region
        %s260 = ssub.s32 %s26, 1
        // Predicated region
        $region13: #{attention_pallas.1} parent=11 // pred_check
          %p261 = pneg %p113
        $region14: #{attention_pallas.1} parent=11 // pred_check_branch
          %263 = sbr.rel (%p261) target = $region16
        $region15: #{attention_pallas.1} parent=11 // pred_region
          %s265 = ssub.s32 128, 128
          %266 = vsyncadd [#allocation9], %s265
          %s268 = sshll.u32 [#allocation10], 4
          %s269 = int_to_ptr.vmem [resolvable:$true] %s268
          %271 = dma.hbm_to_vmem [thread:$0]  %s2, 128, %s269, [#allocation9]
        $region16: #{attention_pallas.1} parent=11 // pred_fallthru
          _
        // Predicated region
        $region17: #{attention_pallas.1} parent=11 // pred_check
          %p272 = pneg %p134
        $region18: #{attention_pallas.1} parent=11 // pred_check_branch
          %274 = sbr.rel (%p272) target = $region20
        $region19: #{attention_pallas.1} parent=11 // pred_region
          %s276 = ssub.s32 128, 128
          %277 = vsyncadd [#allocation12], %s276
          %s279 = sshll.u32 [#allocation11], 4
          %s280 = int_to_ptr.vmem [resolvable:$true] %s279
          %282 = dma.hbm_to_vmem [thread:$0]  %s3, 128, %s280, [#allocation12]
        $region20: #{attention_pallas.1} parent=11 // pred_fallthru
          _
        // Predicated region
        $region21: #{attention_pallas.1} parent=11 // pred_check
          %p283 = pneg %p155
        $region22: #{attention_pallas.1} parent=11 // pred_check_branch
          %285 = sbr.rel (%p283) target = $region24
        $region23: #{attention_pallas.1} parent=11 // pred_region
          %s287 = ssub.s32 256, 256
          %288 = vsyncadd [#allocation12], %s287
          %s289 = sshll.u32 [#allocation13], 4
          %s290 = int_to_ptr.vmem [resolvable:$true] %s289
          %295 = dma.hbm_to_vmem [thread:$0]  %s4, 256, %s290, [#allocation12], 128, 128, 8
        $region24: #{attention_pallas.1} parent=11 // pred_fallthru
          _
        // Predicated region
        $region25: #{attention_pallas.1} parent=11 // pred_check
          %p296 = pneg %p176
        $region26: #{attention_pallas.1} parent=11 // pred_check_branch
          %298 = sbr.rel (%p296) target = $region28
        $region27: #{attention_pallas.1} parent=11 // pred_region
          %s300 = ssub.s32 256, 256
          %301 = vsyncadd [#allocation15], %s300
          %s302 = sshll.u32 [#allocation14], 4
          %s303 = int_to_ptr.vmem [resolvable:$true] %s302
          %308 = dma.hbm_to_vmem [thread:$0]  %s5, 256, %s303, [#allocation15], 128, 128, 8
        $region28: #{attention_pallas.1} parent=11 // pred_fallthru
          _
        // Predicated region
        $region29: #{attention_pallas.1} parent=11 // pred_check
          %p309 = pneg %p197
        $region30: #{attention_pallas.1} parent=11 // pred_check_branch
          %311 = sbr.rel (%p309) target = $region32
        $region31: #{attention_pallas.1} parent=11 // pred_region
          %s313 = ssub.s32 64, 64
          %314 = vsyncadd [#allocation15], %s313
          %s316 = sshll.u32 [#allocation16], 4
          %s317 = int_to_ptr.vmem [resolvable:$true] %s316
          %319 = dma.hbm_to_vmem [thread:$0]  %s6, 64, %s317, [#allocation15]
        $region32: #{attention_pallas.1} parent=11 // pred_fallthru
          _
        // Predicated region
        $region33: #{attention_pallas.1} parent=11 // pred_check
          %p320 = pneg %p218
        $region34: #{attention_pallas.1} parent=11 // pred_check_branch
          %322 = sbr.rel (%p320) target = $region36
        $region35: #{attention_pallas.1} parent=11 // pred_region
          _
        $region36: #{attention_pallas.1} parent=11 // pred_fallthru
          _
      $region12: #{attention_pallas.1} parent=5 // pred_fallthru
        _
      %p323 = scmp.lt.s32.totalorder %s26, 2
      // Predicated region
      $region37: #{attention_pallas.1} parent=5 // pred_check
        %p324 = pneg %p323
      $region38: #{attention_pallas.1} parent=5 // pred_check_branch
        %326 = sbr.rel (%p324) target = $region40
      $region39: #{attention_pallas.1} parent=5 // pred_region
        // Predicated region
        $region41: #{attention_pallas.1} parent=39 // pred_check
          %p327 = pneg %p60
        $region42: #{attention_pallas.1} parent=39 // pred_check_branch
          %329 = sbr.rel (%p327) target = $region44
        $region43: #{attention_pallas.1} parent=39 // pred_region
          %s330 = sand.u32 %s50, 1
          %s331 = scalar_lea.sflag [#allocation6], %s330
          %s332 = sand.u32 %s50, 1
          %s333 = smul.addr %s332, 8
          %s334 = scalar_lea.vmem [#allocation5], %s333
          %s335 = smul.u32 2, %s34
          %s337 = ssub.s32 128, 128
          %338 = vsyncadd %s331, %s337
          %s339 = smul.addr %s33, 2
          %s340 = sadd.s32 %s335, %s339
          %s341 = smul.addr %s340, 64
          %s342 = scalar_lea.hbm %s0, %s341
          %s344 = sshll.u32 %s334, 4
          %s345 = int_to_ptr.vmem [resolvable:$true] %s344
          %347 = dma.hbm_to_vmem [thread:$0]  %s342, 128, %s345, %s331
        $region44: #{attention_pallas.1} parent=39 // pred_fallthru
          _
        // Predicated region
        $region45: #{attention_pallas.1} parent=39 // pred_check
          %p348 = pneg %p86
        $region46: #{attention_pallas.1} parent=39 // pred_check_branch
          %350 = sbr.rel (%p348) target = $region48
        $region47: #{attention_pallas.1} parent=39 // pred_region
          %s351 = sand.u32 %s26, 1
          %s352 = scalar_lea.sflag [#allocation9], %s351
          %s353 = sand.u32 %s76, 1
          %s354 = smul.addr %s353, 8
          %s355 = scalar_lea.vmem [#allocation8], %s354
          %s357 = ssub.s32 128, 128
          %358 = vsyncadd %s352, %s357
          %s359 = smul.addr %s33, 2
          %s360 = smul.addr %s359, 64
          %s361 = scalar_lea.hbm %s1, %s360
          %s363 = sshll.u32 %s355, 4
          %s364 = int_to_ptr.vmem [resolvable:$true] %s363
          %366 = dma.hbm_to_vmem [thread:$0]  %s361, 128, %s364, %s352
        $region48: #{attention_pallas.1} parent=39 // pred_fallthru
          _
      $region40: #{attention_pallas.1} parent=5 // pred_fallthru
        _
      %p367 = scmp.le.s32.totalorder 1, %s26
      %p368 = scmp.lt.s32.totalorder %s26, 3
      %p369 = pnand %p367, %p368
      %p370 = pneg %p369
      // Predicated region
      $region49: #{attention_pallas.1} parent=5 // pred_check
        _
      $region50: #{attention_pallas.1} parent=5 // pred_check_branch
        %372 = sbr.rel (%p369) target = $region52
      $region51: #{attention_pallas.1} parent=5 // pred_region
        %s373 = ssub.s32 %s26, 1
        %s374 = sand.u32 %s53, 1
        %s375 = scalar_lea.sflag [#allocation6], %s374
        %s376 = sand.u32 %s53, 1
        %s377 = smul.addr %s376, 8
        %s378 = scalar_lea.vmem [#allocation5], %s377
        // Predicated region
        $region53: #{attention_pallas.1} parent=51 // pred_check
          %p379 = pneg %p66
        $region54: #{attention_pallas.1} parent=51 // pred_check_branch
          %381 = sbr.rel (%p379) target = $region56
        $region55: #{attention_pallas.1} parent=51 // pred_region
          %382 = dma.done %s375, 128
        $region56: #{attention_pallas.1} parent=51 // pred_fallthru
          _
        %s383 = sand.u32 %s31, 1
        %s384 = scalar_lea.sflag [#allocation9], %s383
        %s385 = sand.u32 %s79, 1
        %s386 = smul.addr %s385, 8
        %s387 = scalar_lea.vmem [#allocation8], %s386
        // Predicated region
        $region57: #{attention_pallas.1} parent=51 // pred_check
          %p388 = pneg %p92
        $region58: #{attention_pallas.1} parent=51 // pred_check_branch
          %390 = sbr.rel (%p388) target = $region60
        $region59: #{attention_pallas.1} parent=51 // pred_region
          %391 = dma.done %s384, 128
        $region60: #{attention_pallas.1} parent=51 // pred_fallthru
          _
        // Predicated region
        $region61: #{attention_pallas.1} parent=51 // pred_check
          %p392 = pneg %p113
        $region62: #{attention_pallas.1} parent=51 // pred_check_branch
          %394 = sbr.rel (%p392) target = $region64
        $region63: #{attention_pallas.1} parent=51 // pred_region
          %395 = dma.done [#allocation9], 128
        $region64: #{attention_pallas.1} parent=51 // pred_fallthru
          _
        // Predicated region
        $region65: #{attention_pallas.1} parent=51 // pred_check
          %p396 = pneg %p134
        $region66: #{attention_pallas.1} parent=51 // pred_check_branch
          %398 = sbr.rel (%p396) target = $region68
        $region67: #{attention_pallas.1} parent=51 // pred_region
          %399 = dma.done [#allocation12], 128
        $region68: #{attention_pallas.1} parent=51 // pred_fallthru
          _
        // Predicated region
        $region69: #{attention_pallas.1} parent=51 // pred_check
          %p400 = pneg %p155
        $region70: #{attention_pallas.1} parent=51 // pred_check_branch
          %402 = sbr.rel (%p400) target = $region72
        $region71: #{attention_pallas.1} parent=51 // pred_region
          %403 = dma.done [#allocation12], 256
        $region72: #{attention_pallas.1} parent=51 // pred_fallthru
          _
        // Predicated region
        $region73: #{attention_pallas.1} parent=51 // pred_check
          %p404 = pneg %p176
        $region74: #{attention_pallas.1} parent=51 // pred_check_branch
          %406 = sbr.rel (%p404) target = $region76
        $region75: #{attention_pallas.1} parent=51 // pred_region
          %407 = dma.done [#allocation15], 256
        $region76: #{attention_pallas.1} parent=51 // pred_fallthru
          _
        // Predicated region
        $region77: #{attention_pallas.1} parent=51 // pred_check
          %p408 = pneg %p197
        $region78: #{attention_pallas.1} parent=51 // pred_check_branch
          %410 = sbr.rel (%p408) target = $region80
        $region79: #{attention_pallas.1} parent=51 // pred_region
          %411 = dma.done [#allocation15], 64
        $region80: #{attention_pallas.1} parent=51 // pred_fallthru
          _
        %s412 = sand.u32 %s53, 1
        %s413 = scalar_lea.sflag [#allocation6], %s412
        %s414 = sand.u32 %s53, 1
        %s415 = smul.addr %s414, 8
        %s416 = scalar_lea.vmem [#allocation5], %s415
        %p417 = pneg %p66
        %p418 = pneg %p63
        %s419 = sand.u32 %s31, 1
        %s420 = scalar_lea.sflag [#allocation9], %s419
        %s421 = sand.u32 %s79, 1
        %s422 = smul.addr %s421, 8
        %s423 = scalar_lea.vmem [#allocation8], %s422
        %p424 = pneg %p92
        %p425 = pneg %p89
        %p426 = pneg %p113
        %p427 = pneg %p110
        %p428 = pneg %p134
        %p429 = pneg %p131
        %p430 = pneg %p155
        %p431 = pneg %p152
        %p432 = pneg %p176
        %p433 = pneg %p173
        %p434 = pneg %p197
        %p435 = pneg %p194
        %p436 = pneg %p218
        %p437 = pneg %p215
        %p438 = pneg %p246
        %p439 = pneg %p243
        %s440 = sand.u32 %s233, 1
        %s441 = scalar_lea.sflag [#allocation7], %s440
        %s442 = sand.u32 %s233, 1
        %s443 = smul.addr %s442, 8
        %s444 = scalar_lea.vmem [#allocation17], %s443
        %s445 = smul.u32 2, %s36
        %s446 = smul.u32 2, %s36
        %p448 = scmp.eq.s32.totalorder %s36, 0
        // Predicated region
        $region81: #{attention_pallas.1} parent=51 // pred_check
          %p449 = pneg %p448
        $region82: #{attention_pallas.1} parent=51 // pred_check_branch
          %451 = sbr.rel (%p449) target = $region84
        $region83: #{attention_pallas.1} parent=51 // pred_region
          %v452 = vld [vmem:[%s387] sm:$0xff]
          %v453 = vld [vmem:[#allocation13] sm:$0xff]
          %v454 = vld [vmem:[#allocation13 + $0x8] sm:$0x1f]
          %v455 = vld [vmem:[#allocation14] sm:$0xff]
          %v456 = vld [vmem:[#allocation14 + $0x8] sm:$0x1f]
          %458 = vset.pattern.permute.xlu0 0
          %459 = vperm.xlu0 %458, %v455
          %v460 = vpop.permute.xlu0 %459
          %463 = vset.pattern.permute.xlu0 0
          %464 = vperm.xlu0 %463, %v456
          %v465 = vpop.permute.xlu0 %464
          %v468 = vcombine.high %v452, %v452
          %vm469 = vcmask 31744
          %v471 = vsel %vm469, %v453, 0
          %v474 = vsel %vm469, %v454, 0
          %vm476 = vcmask 1043456
          %v477 = vsel %vm476, %v452, 0
          %v479 = vsel %vm476, %v468, 0
          %481 = vmatprep.subr.mxu0 %v479
          %482 = vmatpush1.msra.mxu0 %v477
          %483 = vmatprep.subr.mxu0 0.0
          %484 = vmatpush1.msra.mxu0 0.0
          %485 = vmatprep.subr.mxu0 0.0
          %486 = vmatpush1.msra.mxu0 0.0
          %487 = vmatprep.subr.mxu0 0.0
          %488 = vmatpush1.msra.mxu0 0.0
          %489 = vmatprep.subr.mxu0 0.0
          %490 = vmatpush1.msra.mxu0 0.0
          %491 = vmatprep.subr.mxu0 0.0
          %492 = vmatpush1.msra.mxu0 0.0
          %493 = vmatprep.subr.mxu0 0.0
          %494 = vmatpush1.msra.mxu0 0.0
          %495 = vmatprep.subr.mxu0 0.0
          %496 = vmatpush1.msra.mxu0 0.0
          %497 = vmatprep.subr.mxu0 0.0
          %498 = vmatpush1.msra.mxu0 0.0
          %499 = vmatprep.subr.mxu0 0.0
          %500 = vmatpush1.msra.mxu0 0.0
          %501 = vmatprep.subr.mxu0 0.0
          %502 = vmatpush1.msra.mxu0 0.0
          %503 = vmatprep.subr.mxu0 0.0
          %504 = vmatpush1.msra.mxu0 0.0
          %505 = vmatprep.subr.mxu0 0.0
          %506 = vmatpush1.msra.mxu0 0.0
          %507 = vmatprep.subr.mxu0 0.0
          %508 = vmatpush1.msra.mxu0 0.0
          %509 = vmatprep.subr.mxu0 0.0
          %510 = vmatpush1.msra.mxu0 0.0
          %511 = vmatprep.subr.mxu0 0.0
          %512 = vmatpush1.msra.mxu0 0.0
          %513 = vmatprep.subr.mxu0 0.0
          %514 = vmatpush1.msra.mxu0 0.0
          %515 = vmatprep.subr.mxu0 0.0
          %516 = vmatpush1.msra.mxu0 0.0
          %517 = vmatprep.subr.mxu0 0.0
          %518 = vmatpush1.msra.mxu0 0.0
          %519 = vmatprep.subr.mxu0 0.0
          %520 = vmatpush1.msra.mxu0 0.0
          %521 = vmatprep.subr.mxu0 0.0
          %522 = vmatpush1.msra.mxu0 0.0
          %523 = vmatprep.subr.mxu0 0.0
          %524 = vmatpush1.msra.mxu0 0.0
          %525 = vmatprep.subr.mxu0 0.0
          %526 = vmatpush1.msra.mxu0 0.0
          %527 = vmatprep.subr.mxu0 0.0
          %528 = vmatpush1.msra.mxu0 0.0
          %529 = vmatprep.subr.mxu0 0.0
          %530 = vmatpush1.msra.mxu0 0.0
          %531 = vmatprep.subr.mxu0 0.0
          %532 = vmatpush1.msra.mxu0 0.0
          %533 = vmatprep.subr.mxu0 0.0
          %534 = vmatpush1.msra.mxu0 0.0
          %535 = vmatprep.subr.mxu0 0.0
          %536 = vmatpush1.msra.mxu0 0.0
          %537 = vmatprep.subr.mxu0 0.0
          %538 = vmatpush1.msra.mxu0 0.0
          %539 = vmatprep.subr.mxu0 0.0
          %540 = vmatpush1.msra.mxu0 0.0
          %541 = vmatprep.subr.mxu0 0.0
          %542 = vmatpush1.msra.mxu0 0.0
          %543 = vmatprep.subr.mxu0 0.0
          %544 = vmatpush1.msra.mxu0 0.0
          %545 = vmatprep.mubr.f32.mxu0 0.0
          %546 = vmatmul.mubr.f32.gmra.mrb[0].mxu0 %v471
          %v547 = vpop.f32.mrb[0].mxu0
          %v548 = vadd.f32 %v460, %v547
          %v549 = vpop.f32.mrb[0].mxu0
          %v550 = vadd.f32 %v460, %v549
          %551 = vmatprep.mubr.f32.mxu0 0.0
          %552 = vmatmul.mubr.f32.gmra.mrb[0].mxu0 %v474
          %v553 = vpop.f32.mrb[0].mxu0
          %v554 = vadd.f32 %v465, %v553
          %v555 = vpop.f32.mrb[0].mxu0
          %v556 = vadd.f32 %v465, %v555
          %557 = vdwg.mxu0
          %v558 = vpack.c.bf16 %v548, %v548
          %v559 = vpack.c.bf16 %v550, %v550
          %v562 = vunpack.c.l.b16 %v558
          %v563 = vunpack.c.l.b16 %v559
          %v564 = vpack.c.b16 %v563, %v562
          %566 = vst [vmem:[#allocation2] sm:$0xff] %v564
          %v567 = vpack.c.bf16 %v554, %v554
          %v568 = vpack.c.bf16 %v556, %v556
          %v571 = vunpack.c.l.b16 %v567
          %v572 = vunpack.c.l.b16 %v568
          %v573 = vpack.c.b16 %v572, %v571
          %vm575 = vcmask 1042432
          %vm576 = vsmask.f32 2304
          %vm577 = vmand %vm575, %vm576
          %vm578 = vcmask 1046532
          %vm579 = vsmask.f32 6400
          %vm580 = vmand %vm578, %vm579
          %vm581 = vmor %vm580, %vm577
          %v582 = vld [vmem:[#allocation3] sm:$0x77]
          %v583 = vsel %vm581, %v573, %v582
          %584 = vst [vmem:[#allocation3] sm:$0x77] %v583
        $region84: #{attention_pallas.1} parent=51 // pred_fallthru
          _
        %v585 = vld [vmem:[%s378] sm:$0xff]
        %v586 = vld [vmem:[#allocation10] sm:$0xff]
        %v587 = vld [vmem:[#allocation11] sm:$0xff]
        %589 = vset.pattern.permute.xlu0 0
        %590 = vperm.xlu0 %589, %v587
        %v591 = vpop.permute.xlu0 %590
        %v594 = vcombine.high %v585, %v585
        %vm595 = vcmask 31744
        %v597 = vsel %vm595, %v586, 0
        %vm599 = vcmask 1043456
        %v600 = vsel %vm599, %v585, 0
        %v602 = vsel %vm599, %v594, 0
        %604 = vmatprep.subr.mxu0 %v602
        %605 = vmatpush1.msra.mxu0 %v600
        %606 = vmatprep.subr.mxu0 0.0
        %607 = vmatpush1.msra.mxu0 0.0
        %608 = vmatprep.subr.mxu0 0.0
        %609 = vmatpush1.msra.mxu0 0.0
        %610 = vmatprep.subr.mxu0 0.0
        %611 = vmatpush1.msra.mxu0 0.0
        %612 = vmatprep.subr.mxu0 0.0
        %613 = vmatpush1.msra.mxu0 0.0
        %614 = vmatprep.subr.mxu0 0.0
        %615 = vmatpush1.msra.mxu0 0.0
        %616 = vmatprep.subr.mxu0 0.0
        %617 = vmatpush1.msra.mxu0 0.0
        %618 = vmatprep.subr.mxu0 0.0
        %619 = vmatpush1.msra.mxu0 0.0
        %620 = vmatprep.subr.mxu0 0.0
        %621 = vmatpush1.msra.mxu0 0.0
        %622 = vmatprep.subr.mxu0 0.0
        %623 = vmatpush1.msra.mxu0 0.0
        %624 = vmatprep.subr.mxu0 0.0
        %625 = vmatpush1.msra.mxu0 0.0
        %626 = vmatprep.subr.mxu0 0.0
        %627 = vmatpush1.msra.mxu0 0.0
        %628 = vmatprep.subr.mxu0 0.0
        %629 = vmatpush1.msra.mxu0 0.0
        %630 = vmatprep.subr.mxu0 0.0
        %631 = vmatpush1.msra.mxu0 0.0
        %632 = vmatprep.subr.mxu0 0.0
        %633 = vmatpush1.msra.mxu0 0.0
        %634 = vmatprep.subr.mxu0 0.0
        %635 = vmatpush1.msra.mxu0 0.0
        %636 = vmatprep.subr.mxu0 0.0
        %637 = vmatpush1.msra.mxu0 0.0
        %638 = vmatprep.subr.mxu0 0.0
        %639 = vmatpush1.msra.mxu0 0.0
        %640 = vmatprep.subr.mxu0 0.0
        %641 = vmatpush1.msra.mxu0 0.0
        %642 = vmatprep.subr.mxu0 0.0
        %643 = vmatpush1.msra.mxu0 0.0
        %644 = vmatprep.subr.mxu0 0.0
        %645 = vmatpush1.msra.mxu0 0.0
        %646 = vmatprep.subr.mxu0 0.0
        %647 = vmatpush1.msra.mxu0 0.0
        %648 = vmatprep.subr.mxu0 0.0
        %649 = vmatpush1.msra.mxu0 0.0
        %650 = vmatprep.subr.mxu0 0.0
        %651 = vmatpush1.msra.mxu0 0.0
        %652 = vmatprep.subr.mxu0 0.0
        %653 = vmatpush1.msra.mxu0 0.0
        %654 = vmatprep.subr.mxu0 0.0
        %655 = vmatpush1.msra.mxu0 0.0
        %656 = vmatprep.subr.mxu0 0.0
        %657 = vmatpush1.msra.mxu0 0.0
        %658 = vmatprep.subr.mxu0 0.0
        %659 = vmatpush1.msra.mxu0 0.0
        %660 = vmatprep.subr.mxu0 0.0
        %661 = vmatpush1.msra.mxu0 0.0
        %662 = vmatprep.subr.mxu0 0.0
        %663 = vmatpush1.msra.mxu0 0.0
        %664 = vmatprep.subr.mxu0 0.0
        %665 = vmatpush1.msra.mxu0 0.0
        %666 = vmatprep.subr.mxu0 0.0
        %667 = vmatpush1.msra.mxu0 0.0
        %668 = vmatprep.mubr.f32.mxu0 0.0
        %669 = vmatmul.mubr.f32.gmra.mrb[0].mxu0 %v597
        %v670 = vpop.f32.mrb[0].mxu0
        %v671 = vadd.f32 %v591, %v670
        %v672 = vpop.f32.mrb[0].mxu0
        %v673 = vadd.f32 %v591, %v672
        %674 = vdwg.mxu0
        %v675 = vpack.c.bf16 %v671, %v671
        %v676 = vpack.c.bf16 %v673, %v673
        %v677 = vld [vmem:[#allocation2] sm:$0xff]
        %678 = vxpose.xlu0.c.b16.start [1/8] %v675, 128
        %679 = vxpose.xlu0.c.b16.cont [2/8] 0, 128
        %680 = vxpose.xlu0.c.b16.cont [3/8] 0, 128
        %681 = vxpose.xlu0.c.b16.cont [4/8] 0, 128
        %682 = vxpose.xlu0.c.b16.cont [5/8] 0, 128
        %683 = vxpose.xlu0.c.b16.cont [6/8] 0, 128
        %684 = vxpose.xlu0.c.b16.cont [7/8] 0, 128
        %685 = vxpose.xlu0.c.b16.end [8/8] 0, 128
        %v686 = vpop.trf.xlu0
        %v687 = vpop.trf.xlu0
        %v688 = vpop.trf.xlu0
        %v689 = vpop.trf.xlu0
        %v690 = vpop.trf.xlu0
        %v691 = vpop.trf.xlu0
        %v692 = vpop.trf.xlu0
        %v693 = vpop.trf.xlu0
        %694 = vxpose.xlu0.c.b16.start [1/8] %v676, 128
        %695 = vxpose.xlu0.c.b16.cont [2/8] 0, 128
        %696 = vxpose.xlu0.c.b16.cont [3/8] 0, 128
        %697 = vxpose.xlu0.c.b16.cont [4/8] 0, 128
        %698 = vxpose.xlu0.c.b16.cont [5/8] 0, 128
        %699 = vxpose.xlu0.c.b16.cont [6/8] 0, 128
        %700 = vxpose.xlu0.c.b16.cont [7/8] 0, 128
        %701 = vxpose.xlu0.c.b16.end [8/8] 0, 128
        %v702 = vpop.trf.xlu0
        %v703 = vpop.trf.xlu0
        %v704 = vpop.trf.xlu0
        %v705 = vpop.trf.xlu0
        %v706 = vpop.trf.xlu0
        %v707 = vpop.trf.xlu0
        %v708 = vpop.trf.xlu0
        %v709 = vpop.trf.xlu0
        %v711 = vunpack.c.l.b16 %v677
        %v712 = vunpack.c.h.b16 %v677
        %v713 = vpack.c.b16 %v711, %v711
        %v714 = vpack.c.b16 %v712, %v712
        %vm715 = vcmask 64512
        %v717 = vsel %vm715, %v686, 0
        %v720 = vsel %vm715, %v687, 0
        %v723 = vsel %vm715, %v688, 0
        %v726 = vsel %vm715, %v689, 0
        %v729 = vsel %vm715, %v690, 0
        %v732 = vsel %vm715, %v691, 0
        %v735 = vsel %vm715, %v692, 0
        %v738 = vsel %vm715, %v693, 0
        %v741 = vsel %vm715, %v702, 0
        %v744 = vsel %vm715, %v703, 0
        %v747 = vsel %vm715, %v704, 0
        %v750 = vsel %vm715, %v705, 0
        %v753 = vsel %vm715, %v706, 0
        %v756 = vsel %vm715, %v707, 0
        %v759 = vsel %vm715, %v708, 0
        %v762 = vsel %vm715, %v709, 0
        %v765 = vsel %vm599, %v713, 0
        %v768 = vsel %vm599, %v714, 0
        %770 = vmatprep.subr.bf16.mxu0 %v768
        %771 = vmatpush1.bf16.msra.mxu0 %v765
        %772 = vmatprep.subr.bf16.mxu0 0
        %773 = vmatpush1.bf16.msra.mxu0 0
        %774 = vmatprep.subr.bf16.mxu0 0
        %775 = vmatpush1.bf16.msra.mxu0 0
        %776 = vmatprep.subr.bf16.mxu0 0
        %777 = vmatpush1.bf16.msra.mxu0 0
        %778 = vmatprep.subr.bf16.mxu0 0
        %779 = vmatpush1.bf16.msra.mxu0 0
        %780 = vmatprep.subr.bf16.mxu0 0
        %781 = vmatpush1.bf16.msra.mxu0 0
        %782 = vmatprep.subr.bf16.mxu0 0
        %783 = vmatpush1.bf16.msra.mxu0 0
        %784 = vmatprep.subr.bf16.mxu0 0
        %785 = vmatpush1.bf16.msra.mxu0 0
        %786 = vmatprep.subr.bf16.mxu0 0
        %787 = vmatpush1.bf16.msra.mxu0 0
        %788 = vmatprep.subr.bf16.mxu0 0
        %789 = vmatpush1.bf16.msra.mxu0 0
        %790 = vmatprep.subr.bf16.mxu0 0
        %791 = vmatpush1.bf16.msra.mxu0 0
        %792 = vmatprep.subr.bf16.mxu0 0
        %793 = vmatpush1.bf16.msra.mxu0 0
        %794 = vmatprep.subr.bf16.mxu0 0
        %795 = vmatpush1.bf16.msra.mxu0 0
        %796 = vmatprep.subr.bf16.mxu0 0
        %797 = vmatpush1.bf16.msra.mxu0 0
        %798 = vmatprep.subr.bf16.mxu0 0
        %799 = vmatpush1.bf16.msra.mxu0 0
        %800 = vmatprep.subr.bf16.mxu0 0
        %801 = vmatpush1.bf16.msra.mxu0 0
        %802 = vmatprep.mubr.bf16.mxu0 0
        %803 = vmatmul.mubr.bf16.gmra.mrb[0].mxu0 %v717
        %v804 = vpop.f32.mrb[0].mxu0
        %v805 = vadd.f32 0.0, %v804
        %v806 = vpop.f32.mrb[0].mxu0
        %v807 = vadd.f32 0.0, %v806
        %v808 = vpop.f32.mrb[0].mxu0
        %v809 = vadd.f32 0.0, %v808
        %v810 = vpop.f32.mrb[0].mxu0
        %v811 = vadd.f32 0.0, %v810
        %812 = vmatprep.mubr.bf16.mxu0 0
        %813 = vmatmul.mubr.bf16.gmra.mrb[0].mxu0 %v720
        %v814 = vpop.f32.mrb[0].mxu0
        %v815 = vadd.f32 0.0, %v814
        %v816 = vpop.f32.mrb[0].mxu0
        %v817 = vadd.f32 0.0, %v816
        %v818 = vpop.f32.mrb[0].mxu0
        %v819 = vadd.f32 0.0, %v818
        %v820 = vpop.f32.mrb[0].mxu0
        %v821 = vadd.f32 0.0, %v820
        %822 = vmatprep.mubr.bf16.mxu0 0
        %823 = vmatmul.mubr.bf16.gmra.mrb[0].mxu0 %v723
        %v824 = vpop.f32.mrb[0].mxu0
        %v825 = vadd.f32 0.0, %v824
        %v826 = vpop.f32.mrb[0].mxu0
        %v827 = vadd.f32 0.0, %v826
        %v828 = vpop.f32.mrb[0].mxu0
        %v829 = vadd.f32 0.0, %v828
        %v830 = vpop.f32.mrb[0].mxu0
        %v831 = vadd.f32 0.0, %v830
        %832 = vmatprep.mubr.bf16.mxu0 0
        %833 = vmatmul.mubr.bf16.gmra.mrb[0].mxu0 %v726
        %v834 = vpop.f32.mrb[0].mxu0
        %v835 = vadd.f32 0.0, %v834
        %v836 = vpop.f32.mrb[0].mxu0
        %v837 = vadd.f32 0.0, %v836
        %v838 = vpop.f32.mrb[0].mxu0
        %v839 = vadd.f32 0.0, %v838
        %v840 = vpop.f32.mrb[0].mxu0
        %v841 = vadd.f32 0.0, %v840
        %842 = vmatprep.mubr.bf16.mxu0 0
        %843 = vmatmul.mubr.bf16.gmra.mrb[0].mxu0 %v729
        %v844 = vpop.f32.mrb[0].mxu0
        %v845 = vadd.f32 0.0, %v844
        %v846 = vpop.f32.mrb[0].mxu0
        %v847 = vadd.f32 0.0, %v846
        %v848 = vpop.f32.mrb[0].mxu0
        %v849 = vadd.f32 0.0, %v848
        %v850 = vpop.f32.mrb[0].mxu0
        %v851 = vadd.f32 0.0, %v850
        %852 = vmatprep.mubr.bf16.mxu0 0
        %853 = vmatmul.mubr.bf16.gmra.mrb[0].mxu0 %v732
        %v854 = vpop.f32.mrb[0].mxu0
        %v855 = vadd.f32 0.0, %v854
        %v856 = vpop.f32.mrb[0].mxu0
        %v857 = vadd.f32 0.0, %v856
        %v858 = vpop.f32.mrb[0].mxu0
        %v859 = vadd.f32 0.0, %v858
        %v860 = vpop.f32.mrb[0].mxu0
        %v861 = vadd.f32 0.0, %v860
        %862 = vmatprep.mubr.bf16.mxu0 0
        %863 = vmatmul.mubr.bf16.gmra.mrb[0].mxu0 %v735
        %v864 = vpop.f32.mrb[0].mxu0
        %v865 = vadd.f32 0.0, %v864
        %v866 = vpop.f32.mrb[0].mxu0
        %v867 = vadd.f32 0.0, %v866
        %v868 = vpop.f32.mrb[0].mxu0
        %v869 = vadd.f32 0.0, %v868
        %v870 = vpop.f32.mrb[0].mxu0
        %v871 = vadd.f32 0.0, %v870
        %872 = vmatprep.mubr.bf16.mxu0 0
        %873 = vmatmul.mubr.bf16.gmra.mrb[0].mxu0 %v738
        %v874 = vpop.f32.mrb[0].mxu0
        %v875 = vadd.f32 0.0, %v874
        %v876 = vpop.f32.mrb[0].mxu0
        %v877 = vadd.f32 0.0, %v876
        %v878 = vpop.f32.mrb[0].mxu0
        %v879 = vadd.f32 0.0, %v878
        %v880 = vpop.f32.mrb[0].mxu0
        %v881 = vadd.f32 0.0, %v880
        %882 = vmatprep.mubr.bf16.mxu0 0
        %883 = vmatmul.mubr.bf16.gmra.mrb[0].mxu0 %v741
        %v884 = vpop.f32.mrb[0].mxu0
        %v885 = vadd.f32 0.0, %v884
        %v886 = vpop.f32.mrb[0].mxu0
        %v887 = vadd.f32 0.0, %v886
        %v888 = vpop.f32.mrb[0].mxu0
        %v889 = vadd.f32 0.0, %v888
        %v890 = vpop.f32.mrb[0].mxu0
        %v891 = vadd.f32 0.0, %v890
        %892 = vmatprep.mubr.bf16.mxu0 0
        %893 = vmatmul.mubr.bf16.gmra.mrb[0].mxu0 %v744
        %v894 = vpop.f32.mrb[0].mxu0
        %v895 = vadd.f32 0.0, %v894
        %v896 = vpop.f32.mrb[0].mxu0
        %v897 = vadd.f32 0.0, %v896
        %v898 = vpop.f32.mrb[0].mxu0
        %v899 = vadd.f32 0.0, %v898
        %v900 = vpop.f32.mrb[0].mxu0
        %v901 = vadd.f32 0.0, %v900
        %902 = vmatprep.mubr.bf16.mxu0 0
        %903 = vmatmul.mubr.bf16.gmra.mrb[0].mxu0 %v747
        %v904 = vpop.f32.mrb[0].mxu0
        %v905 = vadd.f32 0.0, %v904
        %v906 = vpop.f32.mrb[0].mxu0
        %v907 = vadd.f32 0.0, %v906
        %v908 = vpop.f32.mrb[0].mxu0
        %v909 = vadd.f32 0.0, %v908
        %v910 = vpop.f32.mrb[0].mxu0
        %v911 = vadd.f32 0.0, %v910
        %912 = vmatprep.mubr.bf16.mxu0 0
        %913 = vmatmul.mubr.bf16.gmra.mrb[0].mxu0 %v750
        %v914 = vpop.f32.mrb[0].mxu0
        %v915 = vadd.f32 0.0, %v914
        %v916 = vpop.f32.mrb[0].mxu0
        %v917 = vadd.f32 0.0, %v916
        %v918 = vpop.f32.mrb[0].mxu0
        %v919 = vadd.f32 0.0, %v918
        %v920 = vpop.f32.mrb[0].mxu0
        %v921 = vadd.f32 0.0, %v920
        %922 = vmatprep.mubr.bf16.mxu0 0
        %923 = vmatmul.mubr.bf16.gmra.mrb[0].mxu0 %v753
        %v924 = vpop.f32.mrb[0].mxu0
        %v925 = vadd.f32 0.0, %v924
        %v926 = vpop.f32.mrb[0].mxu0
        %v927 = vadd.f32 0.0, %v926
        %v928 = vpop.f32.mrb[0].mxu0
        %v929 = vadd.f32 0.0, %v928
        %v930 = vpop.f32.mrb[0].mxu0
        %v931 = vadd.f32 0.0, %v930
        %932 = vmatprep.mubr.bf16.mxu0 0
        %933 = vmatmul.mubr.bf16.gmra.mrb[0].mxu0 %v756
        %v934 = vpop.f32.mrb[0].mxu0
        %v935 = vadd.f32 0.0, %v934
        %v936 = vpop.f32.mrb[0].mxu0
        %v937 = vadd.f32 0.0, %v936
        %v938 = vpop.f32.mrb[0].mxu0
        %v939 = vadd.f32 0.0, %v938
        %v940 = vpop.f32.mrb[0].mxu0
        %v941 = vadd.f32 0.0, %v940
        %942 = vmatprep.mubr.bf16.mxu0 0
        %943 = vmatmul.mubr.bf16.gmra.mrb[0].mxu0 %v759
        %v944 = vpop.f32.mrb[0].mxu0
        %v945 = vadd.f32 0.0, %v944
        %v946 = vpop.f32.mrb[0].mxu0
        %v947 = vadd.f32 0.0, %v946
        %v948 = vpop.f32.mrb[0].mxu0
        %v949 = vadd.f32 0.0, %v948
        %v950 = vpop.f32.mrb[0].mxu0
        %v951 = vadd.f32 0.0, %v950
        %952 = vmatprep.mubr.bf16.mxu0 0
        %953 = vmatmul.mubr.bf16.gmra.mrb[0].mxu0 %v762
        %v954 = vpop.f32.mrb[0].mxu0
        %v955 = vadd.f32 0.0, %v954
        %v956 = vpop.f32.mrb[0].mxu0
        %v957 = vadd.f32 0.0, %v956
        %v958 = vpop.f32.mrb[0].mxu0
        %v959 = vadd.f32 0.0, %v958
        %v960 = vpop.f32.mrb[0].mxu0
        %v961 = vadd.f32 0.0, %v960
        %962 = vdwg.mxu0
        %v963 = vmax.f32 %v805, %v807
        %964 = vmax.xlane.f32.xlu0 %v963
        %v965 = vpop.xlane.xlu0 %964
        %v966 = vmax.f32 %v809, %v811
        %967 = vmax.xlane.f32.xlu0 %v966
        %v968 = vpop.xlane.xlu0 %967
        %v969 = vmax.f32 %v815, %v817
        %970 = vmax.xlane.f32.xlu0 %v969
        %v971 = vpop.xlane.xlu0 %970
        %v972 = vmax.f32 %v819, %v821
        %973 = vmax.xlane.f32.xlu0 %v972
        %v974 = vpop.xlane.xlu0 %973
        %v975 = vmax.f32 %v825, %v827
        %976 = vmax.xlane.f32.xlu0 %v975
        %v977 = vpop.xlane.xlu0 %976
        %v978 = vmax.f32 %v829, %v831
        %979 = vmax.xlane.f32.xlu0 %v978
        %v980 = vpop.xlane.xlu0 %979
        %v981 = vmax.f32 %v835, %v837
        %982 = vmax.xlane.f32.xlu0 %v981
        %v983 = vpop.xlane.xlu0 %982
        %v984 = vmax.f32 %v839, %v841
        %985 = vmax.xlane.f32.xlu0 %v984
        %v986 = vpop.xlane.xlu0 %985
        %v987 = vmax.f32 %v845, %v847
        %988 = vmax.xlane.f32.xlu0 %v987
        %v989 = vpop.xlane.xlu0 %988
        %v990 = vmax.f32 %v849, %v851
        %991 = vmax.xlane.f32.xlu0 %v990
        %v992 = vpop.xlane.xlu0 %991
        %v993 = vmax.f32 %v855, %v857
        %994 = vmax.xlane.f32.xlu0 %v993
        %v995 = vpop.xlane.xlu0 %994
        %v996 = vmax.f32 %v859, %v861
        %997 = vmax.xlane.f32.xlu0 %v996
        %v998 = vpop.xlane.xlu0 %997
        %v999 = vmax.f32 %v865, %v867
        %1000 = vmax.xlane.f32.xlu0 %v999
        %v1001 = vpop.xlane.xlu0 %1000
        %v1002 = vmax.f32 %v869, %v871
        %1003 = vmax.xlane.f32.xlu0 %v1002
        %v1004 = vpop.xlane.xlu0 %1003
        %v1005 = vmax.f32 %v875, %v877
        %1006 = vmax.xlane.f32.xlu0 %v1005
        %v1007 = vpop.xlane.xlu0 %1006
        %v1008 = vmax.f32 %v879, %v881
        %1009 = vmax.xlane.f32.xlu0 %v1008
        %v1010 = vpop.xlane.xlu0 %1009
        %v1011 = vmax.f32 %v885, %v887
        %1012 = vmax.xlane.f32.xlu0 %v1011
        %v1013 = vpop.xlane.xlu0 %1012
        %v1014 = vmax.f32 %v889, %v891
        %1015 = vmax.xlane.f32.xlu0 %v1014
        %v1016 = vpop.xlane.xlu0 %1015
        %v1017 = vmax.f32 %v895, %v897
        %1018 = vmax.xlane.f32.xlu0 %v1017
        %v1019 = vpop.xlane.xlu0 %1018
        %v1020 = vmax.f32 %v899, %v901
        %1021 = vmax.xlane.f32.xlu0 %v1020
        %v1022 = vpop.xlane.xlu0 %1021
        %v1023 = vmax.f32 %v905, %v907
        %1024 = vmax.xlane.f32.xlu0 %v1023
        %v1025 = vpop.xlane.xlu0 %1024
        %v1026 = vmax.f32 %v909, %v911
        %1027 = vmax.xlane.f32.xlu0 %v1026
        %v1028 = vpop.xlane.xlu0 %1027
        %v1029 = vmax.f32 %v915, %v917
        %1030 = vmax.xlane.f32.xlu0 %v1029
        %v1031 = vpop.xlane.xlu0 %1030
        %v1032 = vmax.f32 %v919, %v921
        %1033 = vmax.xlane.f32.xlu0 %v1032
        %v1034 = vpop.xlane.xlu0 %1033
        %v1035 = vmax.f32 %v925, %v927
        %1036 = vmax.xlane.f32.xlu0 %v1035
        %v1037 = vpop.xlane.xlu0 %1036
        %v1038 = vmax.f32 %v929, %v931
        %1039 = vmax.xlane.f32.xlu0 %v1038
        %v1040 = vpop.xlane.xlu0 %1039
        %v1041 = vmax.f32 %v935, %v937
        %1042 = vmax.xlane.f32.xlu0 %v1041
        %v1043 = vpop.xlane.xlu0 %1042
        %v1044 = vmax.f32 %v939, %v941
        %1045 = vmax.xlane.f32.xlu0 %v1044
        %v1046 = vpop.xlane.xlu0 %1045
        %v1047 = vmax.f32 %v945, %v947
        %1048 = vmax.xlane.f32.xlu0 %v1047
        %v1049 = vpop.xlane.xlu0 %1048
        %v1050 = vmax.f32 %v949, %v951
        %1051 = vmax.xlane.f32.xlu0 %v1050
        %v1052 = vpop.xlane.xlu0 %1051
        %v1053 = vmax.f32 %v955, %v957
        %1054 = vmax.xlane.f32.xlu0 %v1053
        %v1055 = vpop.xlane.xlu0 %1054
        %v1056 = vmax.f32 %v959, %v961
        %1057 = vmax.xlane.f32.xlu0 %v1056
        %v1058 = vpop.xlane.xlu0 %1057
        %v1059 = vsub.f32 %v805, %v965
        %v1060 = vsub.f32 %v807, %v965
        %v1061 = vsub.f32 %v809, %v968
        %v1062 = vsub.f32 %v811, %v968
        %v1063 = vsub.f32 %v815, %v971
        %v1064 = vsub.f32 %v817, %v971
        %v1065 = vsub.f32 %v819, %v974
        %v1066 = vsub.f32 %v821, %v974
        %v1067 = vsub.f32 %v825, %v977
        %v1068 = vsub.f32 %v827, %v977
        %v1069 = vsub.f32 %v829, %v980
        %v1070 = vsub.f32 %v831, %v980
        %v1071 = vsub.f32 %v835, %v983
        %v1072 = vsub.f32 %v837, %v983
        %v1073 = vsub.f32 %v839, %v986
        %v1074 = vsub.f32 %v841, %v986
        %v1075 = vsub.f32 %v845, %v989
        %v1076 = vsub.f32 %v847, %v989
        %v1077 = vsub.f32 %v849, %v992
        %v1078 = vsub.f32 %v851, %v992
        %v1079 = vsub.f32 %v855, %v995
        %v1080 = vsub.f32 %v857, %v995
        %v1081 = vsub.f32 %v859, %v998
        %v1082 = vsub.f32 %v861, %v998
        %v1083 = vsub.f32 %v865, %v1001
        %v1084 = vsub.f32 %v867, %v1001
        %v1085 = vsub.f32 %v869, %v1004
        %v1086 = vsub.f32 %v871, %v1004
        %v1087 = vsub.f32 %v875, %v1007
        %v1088 = vsub.f32 %v877, %v1007
        %v1089 = vsub.f32 %v879, %v1010
        %v1090 = vsub.f32 %v881, %v1010
        %v1091 = vsub.f32 %v885, %v1013
        %v1092 = vsub.f32 %v887, %v1013
        %v1093 = vsub.f32 %v889, %v1016
        %v1094 = vsub.f32 %v891, %v1016
        %v1095 = vsub.f32 %v895, %v1019
        %v1096 = vsub.f32 %v897, %v1019
        %v1097 = vsub.f32 %v899, %v1022
        %v1098 = vsub.f32 %v901, %v1022
        %v1099 = vsub.f32 %v905, %v1025
        %v1100 = vsub.f32 %v907, %v1025
        %v1101 = vsub.f32 %v909, %v1028
        %v1102 = vsub.f32 %v911, %v1028
        %v1103 = vsub.f32 %v915, %v1031
        %v1104 = vsub.f32 %v917, %v1031
        %v1105 = vsub.f32 %v919, %v1034
        %v1106 = vsub.f32 %v921, %v1034
        %v1107 = vsub.f32 %v925, %v1037
        %v1108 = vsub.f32 %v927, %v1037
        %v1109 = vsub.f32 %v929, %v1040
        %v1110 = vsub.f32 %v931, %v1040
        %v1111 = vsub.f32 %v935, %v1043
        %v1112 = vsub.f32 %v937, %v1043
        %v1113 = vsub.f32 %v939, %v1046
        %v1114 = vsub.f32 %v941, %v1046
        %v1115 = vsub.f32 %v945, %v1049
        %v1116 = vsub.f32 %v947, %v1049
        %v1117 = vsub.f32 %v949, %v1052
        %v1118 = vsub.f32 %v951, %v1052
        %v1119 = vsub.f32 %v955, %v1055
        %v1120 = vsub.f32 %v957, %v1055
        %v1121 = vsub.f32 %v959, %v1058
        %v1122 = vsub.f32 %v961, %v1058
        %v1123 = vmul.f32 %v1059, 1.442695
        %v1124 = vpow.pop %v1123
        %v1125 = vmul.f32 %v1060, 1.442695
        %v1126 = vpow.pop %v1125
        %v1127 = vmul.f32 %v1061, 1.442695
        %v1128 = vpow.pop %v1127
        %v1129 = vmul.f32 %v1062, 1.442695
        %v1130 = vpow.pop %v1129
        %v1131 = vmul.f32 %v1063, 1.442695
        %v1132 = vpow.pop %v1131
        %v1133 = vmul.f32 %v1064, 1.442695
        %v1134 = vpow.pop %v1133
        %v1135 = vmul.f32 %v1065, 1.442695
        %v1136 = vpow.pop %v1135
        %v1137 = vmul.f32 %v1066, 1.442695
        %v1138 = vpow.pop %v1137
        %v1139 = vmul.f32 %v1067, 1.442695
        %v1140 = vpow.pop %v1139
        %v1141 = vmul.f32 %v1068, 1.442695
        %v1142 = vpow.pop %v1141
        %v1143 = vmul.f32 %v1069, 1.442695
        %v1144 = vpow.pop %v1143
        %v1145 = vmul.f32 %v1070, 1.442695
        %v1146 = vpow.pop %v1145
        %v1147 = vmul.f32 %v1071, 1.442695
        %v1148 = vpow.pop %v1147
        %v1149 = vmul.f32 %v1072, 1.442695
        %v1150 = vpow.pop %v1149
        %v1151 = vmul.f32 %v1073, 1.442695
        %v1152 = vpow.pop %v1151
        %v1153 = vmul.f32 %v1074, 1.442695
        %v1154 = vpow.pop %v1153
        %v1155 = vmul.f32 %v1075, 1.442695
        %v1156 = vpow.pop %v1155
        %v1157 = vmul.f32 %v1076, 1.442695
        %v1158 = vpow.pop %v1157
        %v1159 = vmul.f32 %v1077, 1.442695
        %v1160 = vpow.pop %v1159
        %v1161 = vmul.f32 %v1078, 1.442695
        %v1162 = vpow.pop %v1161
        %v1163 = vmul.f32 %v1079, 1.442695
        %v1164 = vpow.pop %v1163
        %v1165 = vmul.f32 %v1080, 1.442695
        %v1166 = vpow.pop %v1165
        %v1167 = vmul.f32 %v1081, 1.442695
        %v1168 = vpow.pop %v1167
        %v1169 = vmul.f32 %v1082, 1.442695
        %v1170 = vpow.pop %v1169
        %v1171 = vmul.f32 %v1083, 1.442695
        %v1172 = vpow.pop %v1171
        %v1173 = vmul.f32 %v1084, 1.442695
        %v1174 = vpow.pop %v1173
        %v1175 = vmul.f32 %v1085, 1.442695
        %v1176 = vpow.pop %v1175
        %v1177 = vmul.f32 %v1086, 1.442695
        %v1178 = vpow.pop %v1177
        %v1179 = vmul.f32 %v1087, 1.442695
        %v1180 = vpow.pop %v1179
        %v1181 = vmul.f32 %v1088, 1.442695
        %v1182 = vpow.pop %v1181
        %v1183 = vmul.f32 %v1089, 1.442695
        %v1184 = vpow.pop %v1183
        %v1185 = vmul.f32 %v1090, 1.442695
        %v1186 = vpow.pop %v1185
        %v1187 = vmul.f32 %v1091, 1.442695
        %v1188 = vpow.pop %v1187
        %v1189 = vmul.f32 %v1092, 1.442695
        %v1190 = vpow.pop %v1189
        %v1191 = vmul.f32 %v1093, 1.442695
        %v1192 = vpow.pop %v1191
        %v1193 = vmul.f32 %v1094, 1.442695
        %v1194 = vpow.pop %v1193
        %v1195 = vmul.f32 %v1095, 1.442695
        %v1196 = vpow.pop %v1195
        %v1197 = vmul.f32 %v1096, 1.442695
        %v1198 = vpow.pop %v1197
        %v1199 = vmul.f32 %v1097, 1.442695
        %v1200 = vpow.pop %v1199
        %v1201 = vmul.f32 %v1098, 1.442695
        %v1202 = vpow.pop %v1201
        %v1203 = vmul.f32 %v1099, 1.442695
        %v1204 = vpow.pop %v1203
        %v1205 = vmul.f32 %v1100, 1.442695
        %v1206 = vpow.pop %v1205
        %v1207 = vmul.f32 %v1101, 1.442695
        %v1208 = vpow.pop %v1207
        %v1209 = vmul.f32 %v1102, 1.442695
        %v1210 = vpow.pop %v1209
        %v1211 = vmul.f32 %v1103, 1.442695
        %v1212 = vpow.pop %v1211
        %v1213 = vmul.f32 %v1104, 1.442695
        %v1214 = vpow.pop %v1213
        %v1215 = vmul.f32 %v1105, 1.442695
        %v1216 = vpow.pop %v1215
        %v1217 = vmul.f32 %v1106, 1.442695
        %v1218 = vpow.pop %v1217
        %v1219 = vmul.f32 %v1107, 1.442695
        %v1220 = vpow.pop %v1219
        %v1221 = vmul.f32 %v1108, 1.442695
        %v1222 = vpow.pop %v1221
        %v1223 = vmul.f32 %v1109, 1.442695
        %v1224 = vpow.pop %v1223
        %v1225 = vmul.f32 %v1110, 1.442695
        %v1226 = vpow.pop %v1225
        %v1227 = vmul.f32 %v1111, 1.442695
        %v1228 = vpow.pop %v1227
        %v1229 = vmul.f32 %v1112, 1.442695
        %v1230 = vpow.pop %v1229
        %v1231 = vmul.f32 %v1113, 1.442695
        %v1232 = vpow.pop %v1231
        %v1233 = vmul.f32 %v1114, 1.442695
        %v1234 = vpow.pop %v1233
        %v1235 = vmul.f32 %v1115, 1.442695
        %v1236 = vpow.pop %v1235
        %v1237 = vmul.f32 %v1116, 1.442695
        %v1238 = vpow.pop %v1237
        %v1239 = vmul.f32 %v1117, 1.442695
        %v1240 = vpow.pop %v1239
        %v1241 = vmul.f32 %v1118, 1.442695
        %v1242 = vpow.pop %v1241
        %v1243 = vmul.f32 %v1119, 1.442695
        %v1244 = vpow.pop %v1243
        %v1245 = vmul.f32 %v1120, 1.442695
        %v1246 = vpow.pop %v1245
        %v1247 = vmul.f32 %v1121, 1.442695
        %v1248 = vpow.pop %v1247
        %v1249 = vmul.f32 %v1122, 1.442695
        %v1250 = vpow.pop %v1249
        %v1251 = vld [vmem:[#allocation3] sm:$0x77]
        %v1252 = vpack.c.bf16 %v1128, %v1124
        %v1253 = vpack.c.bf16 %v1130, %v1126
        %v1254 = vpack.c.bf16 %v1136, %v1132
        %v1255 = vpack.c.bf16 %v1138, %v1134
        %v1256 = vpack.c.bf16 %v1144, %v1140
        %v1257 = vpack.c.bf16 %v1146, %v1142
        %v1258 = vpack.c.bf16 %v1152, %v1148
        %v1259 = vpack.c.bf16 %v1154, %v1150
        %v1260 = vpack.c.bf16 %v1160, %v1156
        %v1261 = vpack.c.bf16 %v1162, %v1158
        %v1262 = vpack.c.bf16 %v1168, %v1164
        %v1263 = vpack.c.bf16 %v1170, %v1166
        %v1264 = vpack.c.bf16 %v1176, %v1172
        %v1265 = vpack.c.bf16 %v1178, %v1174
        %v1266 = vpack.c.bf16 %v1184, %v1180
        %v1267 = vpack.c.bf16 %v1186, %v1182
        %v1268 = vpack.c.bf16 %v1192, %v1188
        %v1269 = vpack.c.bf16 %v1194, %v1190
        %v1270 = vpack.c.bf16 %v1200, %v1196
        %v1271 = vpack.c.bf16 %v1202, %v1198
        %v1272 = vpack.c.bf16 %v1208, %v1204
        %v1273 = vpack.c.bf16 %v1210, %v1206
        %v1274 = vpack.c.bf16 %v1216, %v1212
        %v1275 = vpack.c.bf16 %v1218, %v1214
        %v1276 = vpack.c.bf16 %v1224, %v1220
        %v1277 = vpack.c.bf16 %v1226, %v1222
        %v1278 = vpack.c.bf16 %v1232, %v1228
        %v1279 = vpack.c.bf16 %v1234, %v1230
        %v1280 = vpack.c.bf16 %v1240, %v1236
        %v1281 = vpack.c.bf16 %v1242, %v1238
        %v1282 = vpack.c.bf16 %v1248, %v1244
        %v1283 = vpack.c.bf16 %v1250, %v1246
        %v1285 = vunpack.c.l.b16 %v1251
        %v1286 = vunpack.c.h.b16 %v1251
        %v1287 = vpack.c.b16 %v1285, %v1285
        %v1288 = vpack.c.b16 %v1286, %v1286
        %1291 = vmatprep.subr.bf16.mxu0 %v1253
        %1292 = vmatpush1.bf16.xpose.msra.mxu0 %v1252
        %1293 = vmatprep.subr.bf16.mxu0 %v1255
        %1294 = vmatpush1.bf16.xpose.msra.mxu0 %v1254
        %1295 = vmatprep.subr.bf16.mxu0 %v1257
        %1296 = vmatpush1.bf16.xpose.msra.mxu0 %v1256
        %1297 = vmatprep.subr.bf16.mxu0 %v1259
        %1298 = vmatpush1.bf16.xpose.msra.mxu0 %v1258
        %1299 = vmatprep.subr.bf16.mxu0 %v1261
        %1300 = vmatpush1.bf16.xpose.msra.mxu0 %v1260
        %1301 = vmatprep.subr.bf16.mxu0 %v1263
        %1302 = vmatpush1.bf16.xpose.msra.mxu0 %v1262
        %1303 = vmatprep.subr.bf16.mxu0 %v1265
        %1304 = vmatpush1.bf16.xpose.msra.mxu0 %v1264
        %1305 = vmatprep.subr.bf16.mxu0 %v1267
        %1306 = vmatpush1.bf16.xpose.msra.mxu0 %v1266
        %1307 = vmatprep.subr.bf16.mxu0 %v1269
        %1308 = vmatpush1.bf16.xpose.msra.mxu0 %v1268
        %1309 = vmatprep.subr.bf16.mxu0 %v1271
        %1310 = vmatpush1.bf16.xpose.msra.mxu0 %v1270
        %1311 = vmatprep.subr.bf16.mxu0 %v1273
        %1312 = vmatpush1.bf16.xpose.msra.mxu0 %v1272
        %1313 = vmatprep.subr.bf16.mxu0 %v1275
        %1314 = vmatpush1.bf16.xpose.msra.mxu0 %v1274
        %1315 = vmatprep.subr.bf16.mxu0 %v1277
        %1316 = vmatpush1.bf16.xpose.msra.mxu0 %v1276
        %1317 = vmatprep.subr.bf16.mxu0 %v1279
        %1318 = vmatpush1.bf16.xpose.msra.mxu0 %v1278
        %1319 = vmatprep.subr.bf16.mxu0 %v1281
        %1320 = vmatpush1.bf16.xpose.msra.mxu0 %v1280
        %1321 = vmatprep.subr.bf16.mxu0 %v1283
        %1322 = vmatpush1.bf16.xpose.msra.mxu0 %v1282
        %1323 = vmatprep.mubr.bf16.mxu0 %v1288
        %1324 = vmatmul.mubr.bf16.gmra.mrb[0].mxu0 %v1287
        %v1325 = vpop.f32.mrb[0].mxu0
        %v1326 = vadd.f32 0.0, %v1325
        %v1327 = vpop.f32.mrb[0].mxu0
        %v1328 = vadd.f32 0.0, %v1327
        %v1329 = vpop.f32.mrb[0].mxu0
        %v1330 = vpop.f32.mrb[0].mxu0
        %1331 = vdwg.mxu0
        %v1332 = vrcp.pop %v1326
        %v1333 = vrcp.pop %v1328
        %v1334 = vlaneseq
        %v1335 = vshrl.u32 %v1334, 7
        %v1336 = vsub.s32 4, %v1335
        %v1337 = vrot.slane %v1332, %v1336
        %v1338 = vlaneseq
        %v1339 = vshrl.u32 %v1338, 7
        %v1340 = vsub.s32 4, %v1339
        %v1341 = vrot.slane %v1333, %v1340
        %v1342 = vmul.f32 %v1326, %v1337
        %v1343 = vmul.f32 %v1328, %v1341
        %v1344 = vld [vmem:[#allocation16] sm:$0xf]
        %1346 = vset.pattern.permute.xlu0 0
        %1347 = vperm.xlu0 %1346, %v1344
        %v1348 = vpop.permute.xlu0 %1347
        %v1350 = vadd.f32 %v1342, %v1348
        %v1351 = vadd.f32 %v1343, %v1348
        %s1352 = sld [smem:[#allocation4]]
        %v1353 = vstv %s1352
        %v1354 = vmul.f32 %v1353, %v1350
        %v1355 = vmul.f32 %v1353, %v1351
        %v1357 = vadd.f32 %v1354, %v585
        %v1358 = vadd.f32 %v1355, %v594
        %v1361 = vcombine.low %v1357, %v1358
        %1363 = vst [vmem:[%s444] sm:$0xff] %v1361
        %s1364 = sand.u32 %s233, 1
        %s1365 = scalar_lea.sflag [#allocation7], %s1364
        %s1366 = sand.u32 %s233, 1
        %s1367 = smul.addr %s1366, 8
        %s1368 = scalar_lea.vmem [#allocation17], %s1367
        // Predicated region
        $region85: #{attention_pallas.1} parent=51 // pred_check
          %p1369 = pneg %p243
        $region86: #{attention_pallas.1} parent=51 // pred_check_branch
          %1371 = sbr.rel (%p1369) target = $region88
        $region87: #{attention_pallas.1} parent=51 // pred_region
          %s1372 = smul.u32 2, %s36
          %s1374 = ssub.s32 128, 128
          %1375 = vsyncadd %s1365, %s1374
          %s1376 = smul.addr %s35, 2
          %s1377 = sadd.s32 %s1372, %s1376
          %s1378 = smul.addr %s1377, 64
          %s1379 = scalar_lea.hbm %s8, %s1378
          %s1381 = sshll.u32 %s1368, 4
          %s1382 = int_to_ptr.vmem [resolvable:$true] %s1381
          %1384 = dma.vmem_to_hbm [thread:$0]  %s1382, 128, %s1379, %s1365
        $region88: #{attention_pallas.1} parent=51 // pred_fallthru
          _
      $region52: #{attention_pallas.1} parent=5 // pred_fallthru
        _
      %p1385 = scmp.le.s32.totalorder 2, %s26
      // Predicated region
      $region89: #{attention_pallas.1} parent=5 // pred_check
        %p1386 = pneg %p1385
      $region90: #{attention_pallas.1} parent=5 // pred_check_branch
        %1388 = sbr.rel (%p1386) target = $region92
      $region91: #{attention_pallas.1} parent=5 // pred_region
        %s1389 = ssub.s32 %s26, 2
        // Predicated region
        $region93: #{attention_pallas.1} parent=91 // pred_check
          %p1390 = pneg %p249
        $region94: #{attention_pallas.1} parent=91 // pred_check_branch
          %1392 = sbr.rel (%p1390) target = $region96
        $region95: #{attention_pallas.1} parent=91 // pred_region
          %s1393 = sand.u32 %s234, 1
          %s1394 = scalar_lea.sflag [#allocation7], %s1393
          %s1395 = sand.u32 %s234, 1
          %s1396 = smul.addr %s1395, 8
          %s1397 = scalar_lea.vmem [#allocation17], %s1396
          %1398 = dma.done %s1394, 128
        $region96: #{attention_pallas.1} parent=91 // pred_fallthru
          _
      $region92: #{attention_pallas.1} parent=5 // pred_fallthru
        _
    $region6: #{attention_pallas.1} parent=1 // loop_footer
      %s30 = sadd.s32 1, %s26
    $region7: #{attention_pallas.1} parent=1 // loop_footer_branch
      %25 = sbr.rel target = $region3
    $region8: #{attention_pallas.1} parent=1 // loop_exit
      _
    %1399 = vsyncpa [#allocation6], 1
    %s1400 = scalar_lea.sflag [#allocation6], 1
    %1401 = vsyncpa %s1400, 1
    %1402 = vsyncpa [#allocation9], 1
    %s1403 = scalar_lea.sflag [#allocation9], 1
    %1404 = vsyncpa %s1403, 1
    %1405 = vsyncpa [#allocation12], 1
    %1406 = vsyncpa [#allocation15], 1
    %1407 = vsyncpa [#allocation7], 1
    %s1408 = scalar_lea.sflag [#allocation7], 1
    %1409 = vsyncpa %s1408, 1

</llo_original>
